<compile_context>
chip_gen: v5e
topology: v5e:2x2
jax: 0.10.0
libtpu: 0.0.40
codegen_flags: <defaults>
</compile_context>

<pallas_src>
import functools

import jax
import jax.numpy as jnp
import numpy as np
from jax.experimental import pallas as pl
from jax.experimental.pallas import tpu as pltpu


def _deconv_kernel(x_ref, w_ref, b_ref, o_ref, *, stride, pad_lo, K,
                   H_pad, W_pad, H_out, W_out, compute_dtype):
    """One batch element per grid step.

    x_ref: (C_in, H, W)            raw (pre-activation) input block (NCHW)
    w_ref: (C_out, K*K*C_in)       flipped ConvTranspose2d weight, matmul layout
    b_ref: (C_out, 1)              bias
    o_ref: (C_out, H_out*W_out)    lane-dense flattened output
    """
    C_in, H, W = x_ref.shape

    # 1) Activation, applied exactly once (f32), then a single cast for the MXU.
    xr = jnp.maximum(x_ref[...], 0.0).astype(compute_dtype)          # (C_in, H, W)

    # 2) Stride dilation + transposed-conv padding along W as one matmul with a
    #    0/1 spread matrix:  S_w[b, q] = 1  iff  q == pad_lo + stride*b.
    b_i = jax.lax.broadcasted_iota(jnp.int32, (W, W_pad), 0)
    q_i = jax.lax.broadcasted_iota(jnp.int32, (W, W_pad), 1)
    s_w = (q_i == pad_lo + stride * b_i).astype(compute_dtype)       # (W, W_pad)
    xw = jnp.dot(xr.reshape(C_in * H, W), s_w,
                 preferred_element_type=compute_dtype)               # (C_in*H, W_pad)
    xw = xw.reshape(C_in, H, W_pad)

    # 3) Same along H (per input channel; C_in is small and static, so this is
    #    an unrolled handful of tiny 2-D matmuls -- no transposes needed).
    p_i = jax.lax.broadcasted_iota(jnp.int32, (H_pad, H), 0)
    a_i = jax.lax.broadcasted_iota(jnp.int32, (H_pad, H), 1)
    s_h = (p_i == pad_lo + stride * a_i).astype(compute_dtype)       # (H_pad, H)
    xp = jnp.concatenate(
        [jnp.dot(s_h, xw[c], preferred_element_type=compute_dtype)[None]
         for c in range(C_in)],
        axis=0)                                                      # (C_in, H_pad, W_pad)

    # 4) im2col: K*K shifted windows stacked once into a single slab.
    wins = [xp[:, kh:kh + H_out, kw:kw + W_out]
            for kh in range(K) for kw in range(K)]                   # (C_in, H_out, W_out) each
    cols = jnp.concatenate(wins, axis=0).reshape(K * K * C_in, H_out * W_out)

    # 5) One fused MXU contraction, f32 accumulation, lane-dense result.
    acc = jnp.dot(w_ref[...], cols, preferred_element_type=jnp.float32)  # (C_out, HW)
    acc = acc + b_ref[...]                                           # bias broadcast over lanes
    o_ref[...] = acc.astype(o_ref.dtype)


def deconv_forward(x_nchw, weight, bias, *, stride, padding, output_padding,
                   dropout_rate=None, compute_dtype=jnp.bfloat16):
    """Forward pass matching DeConv.forward: returns (out_nchw, {}).

    x_nchw : (N, C_in, H, W)      float32 (PyTorch NCHW layout)
    weight : (C_in, C_out, K, K)  ConvTranspose2d weight (PyTorch layout)
    bias   : (C_out,)
    Requires padding < kernel_size (standard ConvTranspose2d usage).
    """
    N, C_in, H, W = x_nchw.shape
    _, C_out, K, _ = weight.shape

    pad_lo = K - 1 - padding
    pad_hi = K - 1 - padding + output_padding
    assert pad_lo >= 0, "this kernel requires padding < kernel_size"
    H_pad = (H - 1) * stride + 1 + pad_lo + pad_hi
    W_pad = (W - 1) * stride + 1 + pad_lo + pad_hi
    H_out = H_pad - K + 1      # == (H-1)*stride - 2*padding + K + output_padding
    W_out = W_pad - K + 1

    # Weight -> correlation/matmul layout: w_mat[co, (kh*K+kw)*C_in + ci]
    #   = weight[ci, co, K-1-kh, K-1-kw]    (tiny tensor; done once per call)
    wf = jnp.flip(weight, axis=(2, 3))
    w_mat = jnp.transpose(wf, (2, 3, 0, 1)).reshape(K * K * C_in, C_out).T
    w_mat = w_mat.astype(compute_dtype)
    b2 = bias.reshape(C_out, 1).astype(jnp.float32)

    kernel = functools.partial(
        _deconv_kernel, stride=stride, pad_lo=pad_lo, K=K,
        H_pad=H_pad, W_pad=W_pad, H_out=H_out, W_out=W_out,
        compute_dtype=compute_dtype)

    out_flat = pl.pallas_call(
        kernel,
        out_shape=jax.ShapeDtypeStruct((N, C_out, H_out * W_out), x_nchw.dtype),
        grid_spec=pltpu.PrefetchScalarGridSpec(
            num_scalar_prefetch=0,
            grid=(N,),
            in_specs=[
                pl.BlockSpec((None, C_in, H, W), lambda n: (n, 0, 0, 0)),
                pl.BlockSpec((C_out, K * K * C_in), lambda n: (0, 0)),
                pl.BlockSpec((C_out, 1), lambda n: (0, 0)),
            ],
            out_specs=pl.BlockSpec((None, C_out, H_out * W_out),
                                   lambda n: (n, 0, 0)),
        ),
        compiler_params=pltpu.CompilerParams(
            dimension_semantics=("parallel",)),
    )(x_nchw, w_mat, b2)

    # Metadata-only reshape back to NCHW (no transpose, no extra HBM pass).
    out_nchw = out_flat.reshape(N, C_out, H_out, W_out)

    # TODO(synk): nn.Dropout only acts in training mode; eval-mode Dropout is
    # identity, so dropout_rate is accepted but ignored here.
    del dropout_rate
    return out_nchw, {}


def _reference(x_nchw, weight, bias, *, stride, padding, output_padding):
    """Pure-JAX f32 reference (ReLU -> ConvTranspose2d), for verification."""
    N, C_in, H, W = x_nchw.shape
    _, C_out, K, _ = weight.shape
    H_up = (H - 1) * stride + 1
    W_up = (W - 1) * stride + 1
    x_up = jnp.zeros((N, C_in, H_up, W_up), x_nchw.dtype)
    x_up = x_up.at[:, :, ::stride, ::stride].set(x_nchw)
    pad_lo = K - 1 - padding
    pad_hi = K - 1 - padding + output_padding
    x_pad = jnp.pad(x_up, ((0, 0), (0, 0), (pad_lo, pad_hi), (pad_lo, pad_hi)))
    x_pad = jnp.maximum(x_pad, 0.0)
    x_nhwc = jnp.transpose(x_pad, (0, 2, 3, 1))
    w_flip = jnp.transpose(jnp.flip(weight, axis=(2, 3)), (2, 3, 0, 1))
    H_out = (H - 1) * stride - 2 * padding + K + output_padding
    W_out = (W - 1) * stride - 2 * padding + K + output_padding
    out = jnp.zeros((N, H_out, W_out, C_out), jnp.float32)
    for kh in range(K):
        for kw in range(K):
            patch = x_nhwc[:, kh:kh + H_out, kw:kw + W_out, :]
            out = out + jnp.einsum("nhwc,cd->nhwd", patch, w_flip[kh, kw])
    out = out + bias[None, None, None, :]
    return jnp.transpose(out, (0, 3, 1, 2))


if __name__ == "__main__":
    # Module hyper-params (small, consistent with DeConv): upsample 16x16 -> 32x32
    in_channels, out_channels = 4, 8
    kernel_size, stride, padding, output_padding = 3, 2, 1, 1

    key = jax.random.PRNGKey(0)
    kx, kw_ = jax.random.split(key)

    # Input (NCHW like PyTorch)
    x = jax.random.normal(kx, (2, in_channels, 16, 16), dtype=jnp.float32)

    # Deterministic parameter init: xavier_uniform weight, bias filled with 0.01
    fan_in = out_channels * kernel_size * kernel_size
    fan_out = in_channels * kernel_size * kernel_size
    bound = float(np.sqrt(6.0 / (fan_in + fan_out)))
    weight = jax.random.uniform(
        kw_, (in_channels, out_channels, kernel_size, kernel_size),
        minval=-bound, maxval=bound, dtype=jnp.float32)
    bias = jnp.full((out_channels,), 0.01, dtype=jnp.float32)

    ref = _reference(x, weight, bias, stride=stride, padding=padding,
                     output_padding=output_padding)

    # Exact-path check (f32 MXU operands).
    fwd_f32 = jax.jit(functools.partial(
        deconv_forward, stride=stride, padding=padding,
        output_padding=output_padding, compute_dtype=jnp.float32))
    out_f32, extras = fwd_f32(x, weight, bias)
    out_f32 = jax.block_until_ready(out_f32)
    assert out_f32.shape == (2, out_channels, 32, 32), out_f32.shape
    np.testing.assert_allclose(np.asarray(out_f32), np.asarray(ref),
                               rtol=1e-4, atol=1e-4)
    assert extras == {}

    # Default fast path (bf16 MXU operands, f32 accumulation).
    fwd_bf16 = jax.jit(functools.partial(
        deconv_forward, stride=stride, padding=padding,
        output_padding=output_padding, compute_dtype=jnp.bfloat16))
    out_bf16, _ = fwd_bf16(x, weight, bias)
    out_bf16 = jax.block_until_ready(out_bf16)
    np.testing.assert_allclose(np.asarray(out_bf16), np.asarray(ref),
                               rtol=5e-2, atol=5e-2)

    print("KERNEL_OK")
</pallas_src>

<mosaic_0001>
module attributes {stable_mosaic.version = 11 : i64} {
  func.func @_deconv_kernel(%arg0: i32, %arg1: memref<1x4x16x16xf32, #tpu.memory_space<vmem>>, %arg2: memref<8x36xf32, #tpu.memory_space<vmem>>, %arg3: memref<8x1xf32, #tpu.memory_space<vmem>>, %arg4: memref<1x8x1024xf32, #tpu.memory_space<vmem>>) attributes {dimension_semantics = [#tpu.dimension_semantics<parallel>], iteration_bounds = array<i64: 2>, scalar_prefetch = 0 : i64, scratch_operands = 0 : i64, tpu.core_type = #tpu.core_type<tc>, window_params = [{transform_indices = @transform_0, window_bounds = array<i64: 1, 4, 16, 16>}, {pipeline_mode = #tpu.pipeline_mode<synchronous>, transform_indices = @transform_1, window_bounds = array<i64: 8, 36>}, {pipeline_mode = #tpu.pipeline_mode<synchronous>, transform_indices = @transform_2, window_bounds = array<i64: 8, 1>}, {transform_indices = @transform_3, window_bounds = array<i64: 1, 8, 1024>}]} {
    %c0 = arith.constant 0 : index
    %c0_0 = arith.constant 0 : index
    %c0_1 = arith.constant 0 : index
    %c0_2 = arith.constant 0 : index
    %0 = vector.load %arg1[%c0, %c0_0, %c0_1, %c0_2] : memref<1x4x16x16xf32, #tpu.memory_space<vmem>>, vector<1x4x16x16xf32>
    %1 = vector.shape_cast %0 : vector<1x4x16x16xf32> to vector<4x16x16xf32>
    %cst = arith.constant 0.000000e+00 : f32
    %2 = vector.broadcast %cst : f32 to vector<4x16x16xf32>
    %3 = arith.maximumf %1, %2 : vector<4x16x16xf32>
    %4 = tpu.iota {dimensions = array<i32: 0>} : vector<16x34xi32>
    %5 = tpu.iota {dimensions = array<i32: 1>} : vector<16x34xi32>
    %c2_i32 = arith.constant 2 : i32
    %6 = vector.broadcast %c2_i32 : i32 to vector<16x34xi32>
    %7 = arith.muli %6, %4 : vector<16x34xi32>
    %c1_i32 = arith.constant 1 : i32
    %8 = vector.broadcast %c1_i32 : i32 to vector<16x34xi32>
    %9 = arith.addi %8, %7 : vector<16x34xi32>
    %10 = arith.cmpi eq, %5, %9 : vector<16x34xi32>
    %11 = arith.extui %10 : vector<16x34xi1> to vector<16x34xi32>
    %12 = arith.sitofp %11 : vector<16x34xi32> to vector<16x34xf32>
    %13 = vector.shape_cast %3 : vector<4x16x16xf32> to vector<64x16xf32>
    %cst_3 = arith.constant dense<0.000000e+00> : vector<64x34xf32>
    %14 = tpu.matmul %13, %12, %cst_3 {dimension_numbers = #tpu.dot_dimension_numbers<[1], [0], [0], [1], [0, 0, 1, 1], [], []>} : vector<64x16xf32>, vector<16x34xf32>, vector<64x34xf32> -> vector<64x34xf32>
    %15 = vector.shape_cast %14 : vector<64x34xf32> to vector<4x16x34xf32>
    %16 = tpu.iota {dimensions = array<i32: 0>} : vector<34x16xi32>
    %17 = tpu.iota {dimensions = array<i32: 1>} : vector<34x16xi32>
    %c2_i32_4 = arith.constant 2 : i32
    %18 = vector.broadcast %c2_i32_4 : i32 to vector<34x16xi32>
    %19 = arith.muli %18, %17 : vector<34x16xi32>
    %c1_i32_5 = arith.constant 1 : i32
    %20 = vector.broadcast %c1_i32_5 : i32 to vector<34x16xi32>
    %21 = arith.addi %20, %19 : vector<34x16xi32>
    %22 = arith.cmpi eq, %16, %21 : vector<34x16xi32>
    %23 = arith.extui %22 : vector<34x16xi1> to vector<34x16xi32>
    %24 = arith.sitofp %23 : vector<34x16xi32> to vector<34x16xf32>
    %25 = vector.extract_strided_slice %15 {offsets = [0, 0, 0], sizes = [1, 16, 34], strides = [1, 1, 1]} : vector<4x16x34xf32> to vector<1x16x34xf32>
    %26 = vector.shape_cast %25 : vector<1x16x34xf32> to vector<16x34xf32>
    %cst_6 = arith.constant dense<0.000000e+00> : vector<34x34xf32>
    %27 = tpu.matmul %24, %26, %cst_6 {dimension_numbers = #tpu.dot_dimension_numbers<[1], [0], [0], [1], [0, 0, 1, 1], [], []>} : vector<34x16xf32>, vector<16x34xf32>, vector<34x34xf32> -> vector<34x34xf32>
    %28 = vector.shape_cast %27 : vector<34x34xf32> to vector<1x34x34xf32>
    %29 = vector.extract_strided_slice %15 {offsets = [1, 0, 0], sizes = [1, 16, 34], strides = [1, 1, 1]} : vector<4x16x34xf32> to vector<1x16x34xf32>
    %30 = vector.shape_cast %29 : vector<1x16x34xf32> to vector<16x34xf32>
    %cst_7 = arith.constant dense<0.000000e+00> : vector<34x34xf32>
    %31 = tpu.matmul %24, %30, %cst_7 {dimension_numbers = #tpu.dot_dimension_numbers<[1], [0], [0], [1], [0, 0, 1, 1], [], []>} : vector<34x16xf32>, vector<16x34xf32>, vector<34x34xf32> -> vector<34x34xf32>
    %32 = vector.shape_cast %31 : vector<34x34xf32> to vector<1x34x34xf32>
    %33 = vector.extract_strided_slice %15 {offsets = [2, 0, 0], sizes = [1, 16, 34], strides = [1, 1, 1]} : vector<4x16x34xf32> to vector<1x16x34xf32>
    %34 = vector.shape_cast %33 : vector<1x16x34xf32> to vector<16x34xf32>
    %cst_8 = arith.constant dense<0.000000e+00> : vector<34x34xf32>
    %35 = tpu.matmul %24, %34, %cst_8 {dimension_numbers = #tpu.dot_dimension_numbers<[1], [0], [0], [1], [0, 0, 1, 1], [], []>} : vector<34x16xf32>, vector<16x34xf32>, vector<34x34xf32> -> vector<34x34xf32>
    %36 = vector.shape_cast %35 : vector<34x34xf32> to vector<1x34x34xf32>
    %37 = vector.extract_strided_slice %15 {offsets = [3, 0, 0], sizes = [1, 16, 34], strides = [1, 1, 1]} : vector<4x16x34xf32> to vector<1x16x34xf32>
    %38 = vector.shape_cast %37 : vector<1x16x34xf32> to vector<16x34xf32>
    %cst_9 = arith.constant dense<0.000000e+00> : vector<34x34xf32>
    %39 = tpu.matmul %24, %38, %cst_9 {dimension_numbers = #tpu.dot_dimension_numbers<[1], [0], [0], [1], [0, 0, 1, 1], [], []>} : vector<34x16xf32>, vector<16x34xf32>, vector<34x34xf32> -> vector<34x34xf32>
    %40 = vector.shape_cast %39 : vector<34x34xf32> to vector<1x34x34xf32>
    %41 = tpu.concatenate %28, %32, %36, %40 in 0 : vector<1x34x34xf32>, vector<1x34x34xf32>, vector<1x34x34xf32>, vector<1x34x34xf32> -> vector<4x34x34xf32>
    %42 = vector.extract_strided_slice %41 {offsets = [0, 0, 0], sizes = [4, 32, 32], strides = [1, 1, 1]} : vector<4x34x34xf32> to vector<4x32x32xf32>
    %43 = vector.extract_strided_slice %41 {offsets = [0, 0, 1], sizes = [4, 32, 32], strides = [1, 1, 1]} : vector<4x34x34xf32> to vector<4x32x32xf32>
    %44 = vector.extract_strided_slice %41 {offsets = [0, 0, 2], sizes = [4, 32, 32], strides = [1, 1, 1]} : vector<4x34x34xf32> to vector<4x32x32xf32>
    %45 = vector.extract_strided_slice %41 {offsets = [0, 1, 0], sizes = [4, 32, 32], strides = [1, 1, 1]} : vector<4x34x34xf32> to vector<4x32x32xf32>
    %46 = vector.extract_strided_slice %41 {offsets = [0, 1, 1], sizes = [4, 32, 32], strides = [1, 1, 1]} : vector<4x34x34xf32> to vector<4x32x32xf32>
    %47 = vector.extract_strided_slice %41 {offsets = [0, 1, 2], sizes = [4, 32, 32], strides = [1, 1, 1]} : vector<4x34x34xf32> to vector<4x32x32xf32>
    %48 = vector.extract_strided_slice %41 {offsets = [0, 2, 0], sizes = [4, 32, 32], strides = [1, 1, 1]} : vector<4x34x34xf32> to vector<4x32x32xf32>
    %49 = vector.extract_strided_slice %41 {offsets = [0, 2, 1], sizes = [4, 32, 32], strides = [1, 1, 1]} : vector<4x34x34xf32> to vector<4x32x32xf32>
    %50 = vector.extract_strided_slice %41 {offsets = [0, 2, 2], sizes = [4, 32, 32], strides = [1, 1, 1]} : vector<4x34x34xf32> to vector<4x32x32xf32>
    %51 = tpu.concatenate %42, %43, %44, %45, %46, %47, %48, %49, %50 in 0 : vector<4x32x32xf32>, vector<4x32x32xf32>, vector<4x32x32xf32>, vector<4x32x32xf32>, vector<4x32x32xf32>, vector<4x32x32xf32>, vector<4x32x32xf32>, vector<4x32x32xf32>, vector<4x32x32xf32> -> vector<36x32x32xf32>
    %52 = vector.shape_cast %51 : vector<36x32x32xf32> to vector<36x1024xf32>
    %c0_10 = arith.constant 0 : index
    %c0_11 = arith.constant 0 : index
    %53 = vector.load %arg2[%c0_10, %c0_11] : memref<8x36xf32, #tpu.memory_space<vmem>>, vector<8x36xf32>
    %cst_12 = arith.constant dense<0.000000e+00> : vector<8x1024xf32>
    %54 = tpu.matmul %53, %52, %cst_12 {dimension_numbers = #tpu.dot_dimension_numbers<[1], [0], [0], [1], [0, 0, 1, 1], [], []>} : vector<8x36xf32>, vector<36x1024xf32>, vector<8x1024xf32> -> vector<8x1024xf32>
    %c0_13 = arith.constant 0 : index
    %c0_14 = arith.constant 0 : index
    %55 = vector.load %arg3[%c0_13, %c0_14] : memref<8x1xf32, #tpu.memory_space<vmem>>, vector<8x1xf32>
    %56 = vector.broadcast %55 : vector<8x1xf32> to vector<8x1024xf32>
    %57 = arith.addf %54, %56 : vector<8x1024xf32>
    %c0_15 = arith.constant 0 : index
    %c0_16 = arith.constant 0 : index
    %c0_17 = arith.constant 0 : index
    %58 = vector.load %arg4[%c0_15, %c0_16, %c0_17] : memref<1x8x1024xf32, #tpu.memory_space<vmem>>, vector<1x8x1024xf32>
    %59 = vector.shape_cast %58 : vector<1x8x1024xf32> to vector<8x1024xf32>
    %60 = vector.shape_cast %57 : vector<8x1024xf32> to vector<1x8x1024xf32>
    tpu.vector_store %arg4[%c0_15, %c0_16, %c0_17], %60 {strides = array<i32>} : memref<1x8x1024xf32, #tpu.memory_space<vmem>>, vector<1x8x1024xf32>,
    return
  }
  func.func @transform_0(%arg0: i32) -> (i32, i32, i32, i32) {
    %c0_i32 = arith.constant 0 : i32
    %c0_i32_0 = arith.constant 0 : i32
    %c0_i32_1 = arith.constant 0 : i32
    %c0_i32_2 = arith.constant 0 : i32
    return %arg0, %c0_i32, %c0_i32_0, %c0_i32_1 : i32, i32, i32, i32
  }
  func.func @transform_1(%arg0: i32) -> (i32, i32) {
    %c0_i32 = arith.constant 0 : i32
    %c0_i32_0 = arith.constant 0 : i32
    %c0_i32_1 = arith.constant 0 : i32
    return %c0_i32, %c0_i32_0 : i32, i32
  }
  func.func @transform_2(%arg0: i32) -> (i32, i32) {
    %c0_i32 = arith.constant 0 : i32
    %c0_i32_0 = arith.constant 0 : i32
    %c0_i32_1 = arith.constant 0 : i32
    return %c0_i32, %c0_i32_0 : i32, i32
  }
  func.func @transform_3(%arg0: i32) -> (i32, i32, i32) {
    %c0_i32 = arith.constant 0 : i32
    %c0_i32_0 = arith.constant 0 : i32
    %c0_i32_1 = arith.constant 0 : i32
    return %arg0, %c0_i32, %c0_i32_0 : i32, i32, i32
  }
}

</mosaic_0001>

<llo_original>
// kernel: deconv_forward.1
$region0: #{deconv_forward.1}
  #allocation0 [shape = 'u32[]', space=smem, size = 0x4, offset = 0x4, fixed_abs, tag = 'smem constant byte address 0x4 - core index']
  #allocation1 [shape = 'u32[72,128]{1,0:T(1,128)}', space=vmem, size = 0x9000, scoped, tag = 'internal scratch']
  %s0 = inlined_call_operand.vmem [shape: f32[2,4,16,16], index: 0, kind: input, shape index: {}]
  %s1 = inlined_call_operand.vmem [shape: f32[8,36], index: 1, kind: input, shape index: {}]
  %s2 = inlined_call_operand.vmem [shape: f32[8,1], index: 2, kind: input, shape index: {}]
  %s3 = inlined_call_operand.vmem [shape: f32[2,8,1024], index: 3, kind: output, shape index: {}]
  %s4 = sld [smem:[#allocation0]]
  $region45: #{deconv_forward.1} parent=0
    _
  %s6 = ssub.s32 1, %s4
  %s7 = scalar_select 0, %s6, %s4
  loop: start=0, step=1, limit=4
  $region2: #{deconv_forward.1} parent=0 // loop_pre_header
    _
  $region3: #{deconv_forward.1} parent=0 // loop_header
    %s9 = sphi 0, %s13
    %p10 = scmp.ge.s32.totalorder %s9, 4
    %s19 = sphi 0, %s21
    %s22 = sphi 0, %s19
    %s23 = sphi 0, %s22
    %s39 = sphi 0, %s23
    %s43 = sphi 0, %s43
    %s45 = sphi 0, %s43
    %s46 = sphi 0, %s45
    %s60 = sphi 0, %s46
    %s64 = sphi 0, %s64
    %s66 = sphi 0, %s64
    %s67 = sphi 0, %s66
    %s81 = sphi 0, %s67
    %s87 = sphi 0, %s89
    %s90 = sphi 0, %s87
    %s91 = sphi 0, %s90
    %s107 = sphi 0, %s91
  $region4: #{deconv_forward.1} parent=0 // loop_header_branch
    %12 = sbr.rel (%p10) target = $region8
  $region5: #{deconv_forward.1} parent=0 // loop_body
    %s14 = ssub.s32 %s9, 1
    %s15 = ssub.s32 %s9, 2
    %s16 = sadd.s32 %s9, 1
    %s17 = ssub.s32 %s9, %s16
    %p18 = scmp.eq.s32.totalorder %s17, 0
    %s20 = sadd.s32 %s19, 1
    %s21 = scalar_select %p18, %s19, %s20
    %p24 = pneg %p18
    %p25 = scmp.eq.s32.totalorder %s9, 1
    %p26 = por %p24, %p25
    %p27 = scmp.ne.s32.totalorder %s19, %s22
    %p28 = scmp.eq.s32.totalorder %s9, 0
    %p29 = por %p27, %p28
    %p30 = scmp.ne.s32.totalorder %s19, %s22
    %p31 = scmp.eq.s32.totalorder %s14, 1
    %p32 = por %p30, %p31
    %p33 = scmp.ne.s32.totalorder %s22, %s23
    %p34 = scmp.eq.s32.totalorder %s14, 0
    %p35 = por %p33, %p34
    %p36 = scmp.ne.s32.totalorder %s22, %s23
    %p37 = scmp.eq.s32.totalorder %s15, 1
    %p38 = por %p36, %p37
    %p40 = scmp.ne.s32.totalorder %s23, %s39
    %p41 = scmp.eq.s32.totalorder %s15, 0
    %p42 = por %p40, %p41
    %s44 = sadd.s32 %s43, 1
    %p47 = scmp.eq.s32.totalorder %s9, 1
    %p48 = scmp.ne.s32.totalorder %s43, %s45
    %p49 = scmp.eq.s32.totalorder %s9, 0
    %p50 = por %p48, %p49
    %p51 = scmp.ne.s32.totalorder %s43, %s45
    %p52 = scmp.eq.s32.totalorder %s14, 1
    %p53 = por %p51, %p52
    %p54 = scmp.ne.s32.totalorder %s45, %s46
    %p55 = scmp.eq.s32.totalorder %s14, 0
    %p56 = por %p54, %p55
    %p57 = scmp.ne.s32.totalorder %s45, %s46
    %p58 = scmp.eq.s32.totalorder %s15, 1
    %p59 = por %p57, %p58
    %p61 = scmp.ne.s32.totalorder %s46, %s60
    %p62 = scmp.eq.s32.totalorder %s15, 0
    %p63 = por %p61, %p62
    %s65 = sadd.s32 %s64, 1
    %p68 = scmp.eq.s32.totalorder %s9, 1
    %p69 = scmp.ne.s32.totalorder %s64, %s66
    %p70 = scmp.eq.s32.totalorder %s9, 0
    %p71 = por %p69, %p70
    %p72 = scmp.ne.s32.totalorder %s64, %s66
    %p73 = scmp.eq.s32.totalorder %s14, 1
    %p74 = por %p72, %p73
    %p75 = scmp.ne.s32.totalorder %s66, %s67
    %p76 = scmp.eq.s32.totalorder %s14, 0
    %p77 = por %p75, %p76
    %p78 = scmp.ne.s32.totalorder %s66, %s67
    %p79 = scmp.eq.s32.totalorder %s15, 1
    %p80 = por %p78, %p79
    %p82 = scmp.ne.s32.totalorder %s67, %s81
    %p83 = scmp.eq.s32.totalorder %s15, 0
    %p84 = por %p82, %p83
    %s85 = ssub.s32 %s9, %s16
    %p86 = scmp.eq.s32.totalorder %s85, 0
    %s88 = sadd.s32 %s87, 1
    %s89 = scalar_select %p86, %s87, %s88
    %p92 = pneg %p86
    %p93 = scmp.eq.s32.totalorder %s9, 1
    %p94 = por %p92, %p93
    %p95 = scmp.ne.s32.totalorder %s87, %s90
    %p96 = scmp.eq.s32.totalorder %s9, 0
    %p97 = por %p95, %p96
    %p98 = scmp.ne.s32.totalorder %s87, %s90
    %p99 = scmp.eq.s32.totalorder %s14, 1
    %p100 = por %p98, %p99
    %p101 = scmp.ne.s32.totalorder %s90, %s91
    %p102 = scmp.eq.s32.totalorder %s14, 0
    %p103 = por %p101, %p102
    %p104 = scmp.ne.s32.totalorder %s90, %s91
    %p105 = scmp.eq.s32.totalorder %s15, 1
    %p106 = por %p104, %p105
    %p108 = scmp.ne.s32.totalorder %s91, %s107
    %p109 = scmp.eq.s32.totalorder %s15, 0
    %p110 = por %p108, %p109
    %p111 = scmp.le.s32.totalorder 1, %s9
    %p112 = scmp.lt.s32.totalorder %s9, 3
    %p113 = pnand %p111, %p112
    %p114 = pneg %p113
    // Predicated region
    $region9: #{deconv_forward.1} parent=5 // pred_check
      _
    $region10: #{deconv_forward.1} parent=5 // pred_check_branch
      %116 = sbr.rel (%p113) target = $region12
    $region11: #{deconv_forward.1} parent=5 // pred_region
      %s117 = ssub.s32 %s9, 1
      // Predicated region
      $region13: #{deconv_forward.1} parent=11 // pred_check
        %p118 = pneg %p56
      $region14: #{deconv_forward.1} parent=11 // pred_check_branch
        %120 = sbr.rel (%p118) target = $region16
      $region15: #{deconv_forward.1} parent=11 // pred_region
        _
      $region16: #{deconv_forward.1} parent=11 // pred_fallthru
        _
      // Predicated region
      $region17: #{deconv_forward.1} parent=11 // pred_check
        %p121 = pneg %p77
      $region18: #{deconv_forward.1} parent=11 // pred_check_branch
        %123 = sbr.rel (%p121) target = $region20
      $region19: #{deconv_forward.1} parent=11 // pred_region
        _
      $region20: #{deconv_forward.1} parent=11 // pred_fallthru
        _
    $region12: #{deconv_forward.1} parent=5 // pred_fallthru
      _
    %p124 = scmp.lt.s32.totalorder %s9, 2
    // Predicated region
    $region21: #{deconv_forward.1} parent=5 // pred_check
      %p125 = pneg %p124
    $region22: #{deconv_forward.1} parent=5 // pred_check_branch
      %127 = sbr.rel (%p125) target = $region24
    $region23: #{deconv_forward.1} parent=5 // pred_region
      // Predicated region
      $region25: #{deconv_forward.1} parent=23 // pred_check
        %p128 = pneg %p29
      $region26: #{deconv_forward.1} parent=23 // pred_check_branch
        %130 = sbr.rel (%p128) target = $region28
      $region27: #{deconv_forward.1} parent=23 // pred_region
        %p131 = scmp.lt.s32.totalorder %s9, 1
        %s132 = scalar_select %p131, %s9, 1
        %s133 = smul.addr %s132, 8
        %s134 = smul.addr %s133, 8
        %s135 = scalar_lea.vmem %s0, %s134
      $region28: #{deconv_forward.1} parent=23 // pred_fallthru
        _
    $region24: #{deconv_forward.1} parent=5 // pred_fallthru
      _
    %p136 = scmp.le.s32.totalorder 1, %s9
    %p137 = scmp.lt.s32.totalorder %s9, 3
    %p138 = pnand %p136, %p137
    %p139 = pneg %p138
    // Predicated region
    $region29: #{deconv_forward.1} parent=5 // pred_check
      _
    $region30: #{deconv_forward.1} parent=5 // pred_check_branch
      %141 = sbr.rel (%p138) target = $region32
    $region31: #{deconv_forward.1} parent=5 // pred_region
      %s142 = ssub.s32 %s9, 1
      %p143 = scmp.lt.s32.totalorder %s14, 1
      %s144 = scalar_select %p143, %s14, 1
      %s145 = smul.addr %s144, 8
      %s146 = smul.addr %s145, 8
      %s147 = scalar_lea.vmem %s0, %s146
      %p148 = pneg %p35
      %p149 = pneg %p32
      %p150 = pneg %p56
      %p151 = pneg %p53
      %p152 = pneg %p77
      %p153 = pneg %p74
      %p154 = pneg %p103
      %p155 = pneg %p100
      %p156 = scmp.lt.s32.totalorder %s14, 1
      %s157 = scalar_select %p156, %s14, 1
      %s158 = smul.addr %s157, 8
      %s159 = smul.addr %s158, 8
      %s160 = scalar_lea.vmem %s3, %s159
      %p161 = scmp.lt.s32.totalorder %s14, 1
      %s162 = scalar_select %p161, %s14, 1
      %s163 = smul.addr %s162, 8
      %s164 = smul.addr %s163, 8
      %s165 = scalar_lea.vmem %s0, %s164
      %p166 = scmp.lt.s32.totalorder %s14, 1
      %s167 = scalar_select %p166, %s14, 1
      %s168 = smul.addr %s167, 8
      %s169 = smul.addr %s168, 8
      %s170 = scalar_lea.vmem %s3, %s169
      %v171 = vld [vmem:[%s165] sm:$0xff]
      %v172 = vld [vmem:[%s165 + $0x8] sm:$0xff]
      %v173 = vld [vmem:[%s165 + $0x10] sm:$0xff]
      %v174 = vld [vmem:[%s165 + $0x18] sm:$0xff]
      %v175 = vld [vmem:[%s165 + $0x20] sm:$0xff]
      %v176 = vld [vmem:[%s165 + $0x28] sm:$0xff]
      %v177 = vld [vmem:[%s165 + $0x30] sm:$0xff]
      %v178 = vld [vmem:[%s165 + $0x38] sm:$0xff]
      %v179 = vmax.f32 %v171, 0.0
      %v180 = vmax.f32 %v172, 0.0
      %v181 = vmax.f32 %v173, 0.0
      %v182 = vmax.f32 %v174, 0.0
      %v183 = vmax.f32 %v175, 0.0
      %v184 = vmax.f32 %v176, 0.0
      %v185 = vmax.f32 %v177, 0.0
      %v186 = vmax.f32 %v178, 0.0
      %v187 = vlaneseq
      %v188 = vshrl.u32 %v187, 7
      %v189 = vadd.s32 %v188, 8
      %v190 = vlaneseq
      %v191 = vand.u32 %v190, 127
      %v192 = vmul.u32 %v188, 2
      %v193 = vmul.u32 %v189, 2
      %v194 = vadd.s32 %v192, 1
      %v195 = vadd.s32 %v193, 1
      %vm196 = vcmp.eq.s32.totalorder %v191, %v194
      %vm197 = vcmp.eq.s32.totalorder %v191, %v195
      %v198 = vsel %vm196, 1, 0
      %v199 = vsel %vm197, 1, 0
      %v200 = vcvt.s32.f32 %v198
      %v201 = vcvt.s32.f32 %v199
      %vm202 = vcmask 130048
      %v204 = vsel %vm202, %v179, 0
      %v207 = vsel %vm202, %v180, 0
      %v210 = vsel %vm202, %v181, 0
      %v213 = vsel %vm202, %v182, 0
      %v216 = vsel %vm202, %v183, 0
      %v219 = vsel %vm202, %v184, 0
      %v222 = vsel %vm202, %v185, 0
      %v225 = vsel %vm202, %v186, 0
      %227 = vmatpush.msra.mxu0 0.0
      %228 = vmatpush.msra.mxu0 0.0
      %229 = vmatpush.msra.mxu0 0.0
      %230 = vmatpush.msra.mxu0 0.0
      %231 = vmatpush.msra.mxu0 0.0
      %232 = vmatpush.msra.mxu0 0.0
      %233 = vmatpush.msra.mxu0 0.0
      %234 = vmatpush.msra.mxu0 0.0
      %235 = vmatpush.msra.mxu0 0.0
      %236 = vmatpush.msra.mxu0 0.0
      %237 = vmatpush.msra.mxu0 0.0
      %238 = vmatpush.msra.mxu0 0.0
      %239 = vmatpush.msra.mxu0 0.0
      %240 = vmatpush.msra.mxu0 0.0
      %241 = vmatpush.msra.mxu0 %v201
      %242 = vmatpush.msra.mxu0 %v200
      %243 = vmatmul.f32.gmra.mxu0 %v204
      %v244 = vpop.f32.mrf.mxu0
      %v245 = vadd.f32 0.0, %v244
      %246 = vmatmul.f32.gmra.mxu0 %v207
      %v247 = vpop.f32.mrf.mxu0
      %v248 = vadd.f32 0.0, %v247
      %249 = vmatmul.f32.gmra.mxu0 %v210
      %v250 = vpop.f32.mrf.mxu0
      %v251 = vadd.f32 0.0, %v250
      %252 = vmatmul.f32.gmra.mxu0 %v213
      %v253 = vpop.f32.mrf.mxu0
      %v254 = vadd.f32 0.0, %v253
      %255 = vmatmul.f32.gmra.mxu0 %v216
      %v256 = vpop.f32.mrf.mxu0
      %v257 = vadd.f32 0.0, %v256
      %258 = vmatmul.f32.gmra.mxu0 %v219
      %v259 = vpop.f32.mrf.mxu0
      %v260 = vadd.f32 0.0, %v259
      %261 = vmatmul.f32.gmra.mxu0 %v222
      %v262 = vpop.f32.mrf.mxu0
      %v263 = vadd.f32 0.0, %v262
      %264 = vmatmul.f32.gmra.mxu0 %v225
      %v265 = vpop.f32.mrf.mxu0
      %v266 = vadd.f32 0.0, %v265
      %267 = vdwg.mxu0
      %v268 = vadd.s32 %v188, 16
      %v269 = vadd.s32 %v188, 24
      %v270 = vadd.s32 %v188, 32
      %v271 = vmul.u32 %v191, 2
      %v272 = vadd.s32 %v271, 1
      %vm273 = vcmp.eq.s32.totalorder %v188, %v272
      %vm274 = vcmp.eq.s32.totalorder %v189, %v272
      %vm275 = vcmp.eq.s32.totalorder %v268, %v272
      %vm276 = vcmp.eq.s32.totalorder %v269, %v272
      %vm277 = vcmp.eq.s32.totalorder %v270, %v272
      %v278 = vsel %vm273, 1, 0
      %v279 = vsel %vm274, 1, 0
      %v280 = vsel %vm275, 1, 0
      %v281 = vsel %vm276, 1, 0
      %v282 = vsel %vm277, 1, 0
      %v283 = vcvt.s32.f32 %v278
      %v284 = vcvt.s32.f32 %v279
      %v285 = vcvt.s32.f32 %v280
      %v286 = vcvt.s32.f32 %v281
      %v287 = vcvt.s32.f32 %v282
      %v289 = vsel %vm202, %v283, 0
      %v292 = vsel %vm202, %v284, 0
      %v295 = vsel %vm202, %v285, 0
      %v298 = vsel %vm202, %v286, 0
      %v301 = vsel %vm202, %v287, 0
      %303 = vmatpush.msra.mxu0 0.0
      %304 = vmatpush.msra.mxu0 0.0
      %305 = vmatpush.msra.mxu0 0.0
      %306 = vmatpush.msra.mxu0 0.0
      %307 = vmatpush.msra.mxu0 0.0
      %308 = vmatpush.msra.mxu0 0.0
      %309 = vmatpush.msra.mxu0 0.0
      %310 = vmatpush.msra.mxu0 0.0
      %311 = vmatpush.msra.mxu0 0.0
      %312 = vmatpush.msra.mxu0 0.0
      %313 = vmatpush.msra.mxu0 0.0
      %314 = vmatpush.msra.mxu0 0.0
      %315 = vmatpush.msra.mxu0 0.0
      %316 = vmatpush.msra.mxu0 0.0
      %317 = vmatpush.msra.mxu0 %v248
      %318 = vmatpush.msra.mxu0 %v245
      %319 = vmatmul.f32.gmra.mxu0 %v289
      %v320 = vpop.f32.mrf.mxu0
      %v321 = vadd.f32 0.0, %v320
      %322 = vmatmul.f32.gmra.mxu0 %v292
      %v323 = vpop.f32.mrf.mxu0
      %v324 = vadd.f32 0.0, %v323
      %325 = vmatmul.f32.gmra.mxu0 %v295
      %v326 = vpop.f32.mrf.mxu0
      %v327 = vadd.f32 0.0, %v326
      %328 = vmatmul.f32.gmra.mxu0 %v298
      %v329 = vpop.f32.mrf.mxu0
      %v330 = vadd.f32 0.0, %v329
      %331 = vmatmul.f32.gmra.mxu0 %v301
      %v332 = vpop.f32.mrf.mxu0
      %v333 = vadd.f32 0.0, %v332
      %334 = vdwg.mxu0
      %335 = vmatpush.msra.mxu0 0.0
      %336 = vmatpush.msra.mxu0 0.0
      %337 = vmatpush.msra.mxu0 0.0
      %338 = vmatpush.msra.mxu0 0.0
      %339 = vmatpush.msra.mxu0 0.0
      %340 = vmatpush.msra.mxu0 0.0
      %341 = vmatpush.msra.mxu0 0.0
      %342 = vmatpush.msra.mxu0 0.0
      %343 = vmatpush.msra.mxu0 0.0
      %344 = vmatpush.msra.mxu0 0.0
      %345 = vmatpush.msra.mxu0 0.0
      %346 = vmatpush.msra.mxu0 0.0
      %347 = vmatpush.msra.mxu0 0.0
      %348 = vmatpush.msra.mxu0 0.0
      %349 = vmatpush.msra.mxu0 %v254
      %350 = vmatpush.msra.mxu0 %v251
      %351 = vmatmul.f32.gmra.mxu0 %v289
      %v352 = vpop.f32.mrf.mxu0
      %v353 = vadd.f32 0.0, %v352
      %354 = vmatmul.f32.gmra.mxu0 %v292
      %v355 = vpop.f32.mrf.mxu0
      %v356 = vadd.f32 0.0, %v355
      %357 = vmatmul.f32.gmra.mxu0 %v295
      %v358 = vpop.f32.mrf.mxu0
      %v359 = vadd.f32 0.0, %v358
      %360 = vmatmul.f32.gmra.mxu0 %v298
      %v361 = vpop.f32.mrf.mxu0
      %v362 = vadd.f32 0.0, %v361
      %363 = vmatmul.f32.gmra.mxu0 %v301
      %v364 = vpop.f32.mrf.mxu0
      %v365 = vadd.f32 0.0, %v364
      %366 = vdwg.mxu0
      %367 = vmatpush.msra.mxu0 0.0
      %368 = vmatpush.msra.mxu0 0.0
      %369 = vmatpush.msra.mxu0 0.0
      %370 = vmatpush.msra.mxu0 0.0
      %371 = vmatpush.msra.mxu0 0.0
      %372 = vmatpush.msra.mxu0 0.0
      %373 = vmatpush.msra.mxu0 0.0
      %374 = vmatpush.msra.mxu0 0.0
      %375 = vmatpush.msra.mxu0 0.0
      %376 = vmatpush.msra.mxu0 0.0
      %377 = vmatpush.msra.mxu0 0.0
      %378 = vmatpush.msra.mxu0 0.0
      %379 = vmatpush.msra.mxu0 0.0
      %380 = vmatpush.msra.mxu0 0.0
      %381 = vmatpush.msra.mxu0 %v260
      %382 = vmatpush.msra.mxu0 %v257
      %383 = vmatmul.f32.gmra.mxu0 %v289
      %v384 = vpop.f32.mrf.mxu0
      %v385 = vadd.f32 0.0, %v384
      %386 = vmatmul.f32.gmra.mxu0 %v292
      %v387 = vpop.f32.mrf.mxu0
      %v388 = vadd.f32 0.0, %v387
      %389 = vmatmul.f32.gmra.mxu0 %v295
      %v390 = vpop.f32.mrf.mxu0
      %v391 = vadd.f32 0.0, %v390
      %392 = vmatmul.f32.gmra.mxu0 %v298
      %v393 = vpop.f32.mrf.mxu0
      %v394 = vadd.f32 0.0, %v393
      %395 = vmatmul.f32.gmra.mxu0 %v301
      %v396 = vpop.f32.mrf.mxu0
      %v397 = vadd.f32 0.0, %v396
      %398 = vdwg.mxu0
      %399 = vmatpush.msra.mxu0 0.0
      %400 = vmatpush.msra.mxu0 0.0
      %401 = vmatpush.msra.mxu0 0.0
      %402 = vmatpush.msra.mxu0 0.0
      %403 = vmatpush.msra.mxu0 0.0
      %404 = vmatpush.msra.mxu0 0.0
      %405 = vmatpush.msra.mxu0 0.0
      %406 = vmatpush.msra.mxu0 0.0
      %407 = vmatpush.msra.mxu0 0.0
      %408 = vmatpush.msra.mxu0 0.0
      %409 = vmatpush.msra.mxu0 0.0
      %410 = vmatpush.msra.mxu0 0.0
      %411 = vmatpush.msra.mxu0 0.0
      %412 = vmatpush.msra.mxu0 0.0
      %413 = vmatpush.msra.mxu0 %v266
      %414 = vmatpush.msra.mxu0 %v263
      %415 = vmatmul.f32.gmra.mxu0 %v289
      %v416 = vpop.f32.mrf.mxu0
      %v417 = vadd.f32 0.0, %v416
      %418 = vmatmul.f32.gmra.mxu0 %v292
      %v419 = vpop.f32.mrf.mxu0
      %v420 = vadd.f32 0.0, %v419
      %421 = vmatmul.f32.gmra.mxu0 %v295
      %v422 = vpop.f32.mrf.mxu0
      %v423 = vadd.f32 0.0, %v422
      %424 = vmatmul.f32.gmra.mxu0 %v298
      %v425 = vpop.f32.mrf.mxu0
      %v426 = vadd.f32 0.0, %v425
      %427 = vmatmul.f32.gmra.mxu0 %v301
      %v428 = vpop.f32.mrf.mxu0
      %v429 = vadd.f32 0.0, %v428
      %430 = vdwg.mxu0
      %447 = vrot.lane.b32.xlu0 %v321, 127
      %v448 = vpop.permute.xlu0 %447
      %449 = vrot.lane.b32.xlu0 %v324, 127
      %v450 = vpop.permute.xlu0 %449
      %451 = vrot.lane.b32.xlu0 %v327, 127
      %v452 = vpop.permute.xlu0 %451
      %453 = vrot.lane.b32.xlu0 %v330, 127
      %v454 = vpop.permute.xlu0 %453
      %455 = vrot.lane.b32.xlu0 %v353, 127
      %v456 = vpop.permute.xlu0 %455
      %457 = vrot.lane.b32.xlu0 %v356, 127
      %v458 = vpop.permute.xlu0 %457
      %459 = vrot.lane.b32.xlu0 %v359, 127
      %v460 = vpop.permute.xlu0 %459
      %461 = vrot.lane.b32.xlu0 %v362, 127
      %v462 = vpop.permute.xlu0 %461
      %463 = vrot.lane.b32.xlu0 %v385, 127
      %v464 = vpop.permute.xlu0 %463
      %465 = vrot.lane.b32.xlu0 %v388, 127
      %v466 = vpop.permute.xlu0 %465
      %467 = vrot.lane.b32.xlu0 %v391, 127
      %v468 = vpop.permute.xlu0 %467
      %469 = vrot.lane.b32.xlu0 %v394, 127
      %v470 = vpop.permute.xlu0 %469
      %471 = vrot.lane.b32.xlu0 %v417, 127
      %v472 = vpop.permute.xlu0 %471
      %473 = vrot.lane.b32.xlu0 %v420, 127
      %v474 = vpop.permute.xlu0 %473
      %475 = vrot.lane.b32.xlu0 %v423, 127
      %v476 = vpop.permute.xlu0 %475
      %477 = vrot.lane.b32.xlu0 %v426, 127
      %v478 = vpop.permute.xlu0 %477
      %495 = vrot.lane.b32.xlu0 %v321, 126
      %v496 = vpop.permute.xlu0 %495
      %497 = vrot.lane.b32.xlu0 %v324, 126
      %v498 = vpop.permute.xlu0 %497
      %499 = vrot.lane.b32.xlu0 %v327, 126
      %v500 = vpop.permute.xlu0 %499
      %501 = vrot.lane.b32.xlu0 %v330, 126
      %v502 = vpop.permute.xlu0 %501
      %503 = vrot.lane.b32.xlu0 %v353, 126
      %v504 = vpop.permute.xlu0 %503
      %505 = vrot.lane.b32.xlu0 %v356, 126
      %v506 = vpop.permute.xlu0 %505
      %507 = vrot.lane.b32.xlu0 %v359, 126
      %v508 = vpop.permute.xlu0 %507
      %509 = vrot.lane.b32.xlu0 %v362, 126
      %v510 = vpop.permute.xlu0 %509
      %511 = vrot.lane.b32.xlu0 %v385, 126
      %v512 = vpop.permute.xlu0 %511
      %513 = vrot.lane.b32.xlu0 %v388, 126
      %v514 = vpop.permute.xlu0 %513
      %515 = vrot.lane.b32.xlu0 %v391, 126
      %v516 = vpop.permute.xlu0 %515
      %517 = vrot.lane.b32.xlu0 %v394, 126
      %v518 = vpop.permute.xlu0 %517
      %519 = vrot.lane.b32.xlu0 %v417, 126
      %v520 = vpop.permute.xlu0 %519
      %521 = vrot.lane.b32.xlu0 %v420, 126
      %v522 = vpop.permute.xlu0 %521
      %523 = vrot.lane.b32.xlu0 %v423, 126
      %v524 = vpop.permute.xlu0 %523
      %525 = vrot.lane.b32.xlu0 %v426, 126
      %v526 = vpop.permute.xlu0 %525
      %vm547 = vcmask 1046528
      %v548 = vrot.slane %v321, 1
      %v549 = vrot.slane %v324, 1
      %v550 = vsel %vm547, %v548, %v549
      %v551 = vrot.slane %v327, 1
      %v552 = vsel %vm547, %v549, %v551
      %v553 = vrot.slane %v330, 1
      %v554 = vsel %vm547, %v551, %v553
      %v555 = vrot.slane %v333, 1
      %v556 = vsel %vm547, %v553, %v555
      %v557 = vrot.slane %v353, 1
      %v558 = vrot.slane %v356, 1
      %v559 = vsel %vm547, %v557, %v558
      %v560 = vrot.slane %v359, 1
      %v561 = vsel %vm547, %v558, %v560
      %v562 = vrot.slane %v362, 1
      %v563 = vsel %vm547, %v560, %v562
      %v564 = vrot.slane %v365, 1
      %v565 = vsel %vm547, %v562, %v564
      %v566 = vrot.slane %v385, 1
      %v567 = vrot.slane %v388, 1
      %v568 = vsel %vm547, %v566, %v567
      %v569 = vrot.slane %v391, 1
      %v570 = vsel %vm547, %v567, %v569
      %v571 = vrot.slane %v394, 1
      %v572 = vsel %vm547, %v569, %v571
      %v573 = vrot.slane %v397, 1
      %v574 = vsel %vm547, %v571, %v573
      %v575 = vrot.slane %v417, 1
      %v576 = vrot.slane %v420, 1
      %v577 = vsel %vm547, %v575, %v576
      %v578 = vrot.slane %v423, 1
      %v579 = vsel %vm547, %v576, %v578
      %v580 = vrot.slane %v426, 1
      %v581 = vsel %vm547, %v578, %v580
      %v582 = vrot.slane %v429, 1
      %v583 = vsel %vm547, %v580, %v582
      %600 = vrot.lane.b32.xlu0 %v550, 127
      %v601 = vpop.permute.xlu0 %600
      %602 = vrot.lane.b32.xlu0 %v552, 127
      %v603 = vpop.permute.xlu0 %602
      %604 = vrot.lane.b32.xlu0 %v554, 127
      %v605 = vpop.permute.xlu0 %604
      %606 = vrot.lane.b32.xlu0 %v556, 127
      %v607 = vpop.permute.xlu0 %606
      %608 = vrot.lane.b32.xlu0 %v559, 127
      %v609 = vpop.permute.xlu0 %608
      %610 = vrot.lane.b32.xlu0 %v561, 127
      %v611 = vpop.permute.xlu0 %610
      %612 = vrot.lane.b32.xlu0 %v563, 127
      %v613 = vpop.permute.xlu0 %612
      %614 = vrot.lane.b32.xlu0 %v565, 127
      %v615 = vpop.permute.xlu0 %614
      %616 = vrot.lane.b32.xlu0 %v568, 127
      %v617 = vpop.permute.xlu0 %616
      %618 = vrot.lane.b32.xlu0 %v570, 127
      %v619 = vpop.permute.xlu0 %618
      %620 = vrot.lane.b32.xlu0 %v572, 127
      %v621 = vpop.permute.xlu0 %620
      %622 = vrot.lane.b32.xlu0 %v574, 127
      %v623 = vpop.permute.xlu0 %622
      %624 = vrot.lane.b32.xlu0 %v577, 127
      %v625 = vpop.permute.xlu0 %624
      %626 = vrot.lane.b32.xlu0 %v579, 127
      %v627 = vpop.permute.xlu0 %626
      %628 = vrot.lane.b32.xlu0 %v581, 127
      %v629 = vpop.permute.xlu0 %628
      %630 = vrot.lane.b32.xlu0 %v583, 127
      %v631 = vpop.permute.xlu0 %630
      %648 = vrot.lane.b32.xlu0 %v550, 126
      %v649 = vpop.permute.xlu0 %648
      %650 = vrot.lane.b32.xlu0 %v552, 126
      %v651 = vpop.permute.xlu0 %650
      %652 = vrot.lane.b32.xlu0 %v554, 126
      %v653 = vpop.permute.xlu0 %652
      %654 = vrot.lane.b32.xlu0 %v556, 126
      %v655 = vpop.permute.xlu0 %654
      %656 = vrot.lane.b32.xlu0 %v559, 126
      %v657 = vpop.permute.xlu0 %656
      %658 = vrot.lane.b32.xlu0 %v561, 126
      %v659 = vpop.permute.xlu0 %658
      %660 = vrot.lane.b32.xlu0 %v563, 126
      %v661 = vpop.permute.xlu0 %660
      %662 = vrot.lane.b32.xlu0 %v565, 126
      %v663 = vpop.permute.xlu0 %662
      %664 = vrot.lane.b32.xlu0 %v568, 126
      %v665 = vpop.permute.xlu0 %664
      %666 = vrot.lane.b32.xlu0 %v570, 126
      %v667 = vpop.permute.xlu0 %666
      %668 = vrot.lane.b32.xlu0 %v572, 126
      %v669 = vpop.permute.xlu0 %668
      %670 = vrot.lane.b32.xlu0 %v574, 126
      %v671 = vpop.permute.xlu0 %670
      %672 = vrot.lane.b32.xlu0 %v577, 126
      %v673 = vpop.permute.xlu0 %672
      %674 = vrot.lane.b32.xlu0 %v579, 126
      %v675 = vpop.permute.xlu0 %674
      %676 = vrot.lane.b32.xlu0 %v581, 126
      %v677 = vpop.permute.xlu0 %676
      %678 = vrot.lane.b32.xlu0 %v583, 126
      %v679 = vpop.permute.xlu0 %678
      %vm696 = vcmask 1045504
      %v697 = vrot.slane %v321, 2
      %v698 = vrot.slane %v324, 2
      %v699 = vsel %vm696, %v697, %v698
      %v700 = vrot.slane %v327, 2
      %v701 = vsel %vm696, %v698, %v700
      %v702 = vrot.slane %v330, 2
      %v703 = vsel %vm696, %v700, %v702
      %v704 = vrot.slane %v333, 2
      %v705 = vsel %vm696, %v702, %v704
      %v706 = vrot.slane %v353, 2
      %v707 = vrot.slane %v356, 2
      %v708 = vsel %vm696, %v706, %v707
      %v709 = vrot.slane %v359, 2
      %v710 = vsel %vm696, %v707, %v709
      %v711 = vrot.slane %v362, 2
      %v712 = vsel %vm696, %v709, %v711
      %v713 = vrot.slane %v365, 2
      %v714 = vsel %vm696, %v711, %v713
      %v715 = vrot.slane %v385, 2
      %v716 = vrot.slane %v388, 2
      %v717 = vsel %vm696, %v715, %v716
      %v718 = vrot.slane %v391, 2
      %v719 = vsel %vm696, %v716, %v718
      %v720 = vrot.slane %v394, 2
      %v721 = vsel %vm696, %v718, %v720
      %v722 = vrot.slane %v397, 2
      %v723 = vsel %vm696, %v720, %v722
      %v724 = vrot.slane %v417, 2
      %v725 = vrot.slane %v420, 2
      %v726 = vsel %vm696, %v724, %v725
      %v727 = vrot.slane %v423, 2
      %v728 = vsel %vm696, %v725, %v727
      %v729 = vrot.slane %v426, 2
      %v730 = vsel %vm696, %v727, %v729
      %v731 = vrot.slane %v429, 2
      %v732 = vsel %vm696, %v729, %v731
      %749 = vrot.lane.b32.xlu0 %v699, 127
      %v750 = vpop.permute.xlu0 %749
      %751 = vrot.lane.b32.xlu0 %v701, 127
      %v752 = vpop.permute.xlu0 %751
      %753 = vrot.lane.b32.xlu0 %v703, 127
      %v754 = vpop.permute.xlu0 %753
      %755 = vrot.lane.b32.xlu0 %v705, 127
      %v756 = vpop.permute.xlu0 %755
      %757 = vrot.lane.b32.xlu0 %v708, 127
      %v758 = vpop.permute.xlu0 %757
      %759 = vrot.lane.b32.xlu0 %v710, 127
      %v760 = vpop.permute.xlu0 %759
      %761 = vrot.lane.b32.xlu0 %v712, 127
      %v762 = vpop.permute.xlu0 %761
      %763 = vrot.lane.b32.xlu0 %v714, 127
      %v764 = vpop.permute.xlu0 %763
      %765 = vrot.lane.b32.xlu0 %v717, 127
      %v766 = vpop.permute.xlu0 %765
      %767 = vrot.lane.b32.xlu0 %v719, 127
      %v768 = vpop.permute.xlu0 %767
      %769 = vrot.lane.b32.xlu0 %v721, 127
      %v770 = vpop.permute.xlu0 %769
      %771 = vrot.lane.b32.xlu0 %v723, 127
      %v772 = vpop.permute.xlu0 %771
      %773 = vrot.lane.b32.xlu0 %v726, 127
      %v774 = vpop.permute.xlu0 %773
      %775 = vrot.lane.b32.xlu0 %v728, 127
      %v776 = vpop.permute.xlu0 %775
      %777 = vrot.lane.b32.xlu0 %v730, 127
      %v778 = vpop.permute.xlu0 %777
      %779 = vrot.lane.b32.xlu0 %v732, 127
      %v780 = vpop.permute.xlu0 %779
      %797 = vrot.lane.b32.xlu0 %v699, 126
      %v798 = vpop.permute.xlu0 %797
      %799 = vrot.lane.b32.xlu0 %v701, 126
      %v800 = vpop.permute.xlu0 %799
      %801 = vrot.lane.b32.xlu0 %v703, 126
      %v802 = vpop.permute.xlu0 %801
      %803 = vrot.lane.b32.xlu0 %v705, 126
      %v804 = vpop.permute.xlu0 %803
      %805 = vrot.lane.b32.xlu0 %v708, 126
      %v806 = vpop.permute.xlu0 %805
      %807 = vrot.lane.b32.xlu0 %v710, 126
      %v808 = vpop.permute.xlu0 %807
      %809 = vrot.lane.b32.xlu0 %v712, 126
      %v810 = vpop.permute.xlu0 %809
      %811 = vrot.lane.b32.xlu0 %v714, 126
      %v812 = vpop.permute.xlu0 %811
      %813 = vrot.lane.b32.xlu0 %v717, 126
      %v814 = vpop.permute.xlu0 %813
      %815 = vrot.lane.b32.xlu0 %v719, 126
      %v816 = vpop.permute.xlu0 %815
      %817 = vrot.lane.b32.xlu0 %v721, 126
      %v818 = vpop.permute.xlu0 %817
      %819 = vrot.lane.b32.xlu0 %v723, 126
      %v820 = vpop.permute.xlu0 %819
      %821 = vrot.lane.b32.xlu0 %v726, 126
      %v822 = vpop.permute.xlu0 %821
      %823 = vrot.lane.b32.xlu0 %v728, 126
      %v824 = vpop.permute.xlu0 %823
      %825 = vrot.lane.b32.xlu0 %v730, 126
      %v826 = vpop.permute.xlu0 %825
      %827 = vrot.lane.b32.xlu0 %v732, 126
      %v828 = vpop.permute.xlu0 %827
      %v845 = vrot.slane %v385, 4
      %vm846 = vcmask 1047556
      %v847 = vsel %vm846, %v845, %v321
      %v848 = vrot.slane %v321, 4
      %v849 = vsel %vm846, %v385, %v848
      %v851 = vunpack.c.l.s4 1983009808
      %v852 = vunpack.c.0.s8 %v851
      %v853 = vperm.slane %v847, %v852
      %v855 = vunpack.c.l.s4 1983009808
      %v856 = vunpack.c.0.s8 %v855
      %v857 = vperm.slane %v849, %v856
      %v858 = vrot.slane %v417, 4
      %v859 = vsel %vm846, %v858, %v353
      %v860 = vrot.slane %v353, 4
      %v861 = vsel %vm846, %v417, %v860
      %v863 = vunpack.c.l.s4 1983009808
      %v864 = vunpack.c.0.s8 %v863
      %v865 = vperm.slane %v859, %v864
      %v867 = vunpack.c.l.s4 1983009808
      %v868 = vunpack.c.0.s8 %v867
      %v869 = vperm.slane %v861, %v868
      %v870 = vrot.slane %v464, 4
      %v871 = vsel %vm846, %v870, %v448
      %v872 = vrot.slane %v448, 4
      %v873 = vsel %vm846, %v464, %v872
      %v875 = vunpack.c.l.s4 1983009808
      %v876 = vunpack.c.0.s8 %v875
      %v877 = vperm.slane %v871, %v876
      %v879 = vunpack.c.l.s4 1983009808
      %v880 = vunpack.c.0.s8 %v879
      %v881 = vperm.slane %v873, %v880
      %v882 = vrot.slane %v472, 4
      %v883 = vsel %vm846, %v882, %v456
      %v884 = vrot.slane %v456, 4
      %v885 = vsel %vm846, %v472, %v884
      %v887 = vunpack.c.l.s4 1983009808
      %v888 = vunpack.c.0.s8 %v887
      %v889 = vperm.slane %v883, %v888
      %v891 = vunpack.c.l.s4 1983009808
      %v892 = vunpack.c.0.s8 %v891
      %v893 = vperm.slane %v885, %v892
      %v894 = vrot.slane %v865, 4
      %v895 = vsel %vm846, %v894, %v853
      %v896 = vrot.slane %v853, 4
      %v897 = vsel %vm846, %v865, %v896
      %v899 = vunpack.c.l.s4 1934713408
      %v900 = vunpack.c.0.s8 %v899
      %v901 = vperm.slane %v895, %v900
      %v903 = vunpack.c.l.s4 1934713408
      %v904 = vunpack.c.0.s8 %v903
      %v905 = vperm.slane %v897, %v904
      %v906 = vrot.slane %v869, 4
      %v907 = vsel %vm846, %v906, %v857
      %v908 = vrot.slane %v857, 4
      %v909 = vsel %vm846, %v869, %v908
      %v911 = vunpack.c.l.s4 1934713408
      %v912 = vunpack.c.0.s8 %v911
      %v913 = vperm.slane %v907, %v912
      %v915 = vunpack.c.l.s4 1934713408
      %v916 = vunpack.c.0.s8 %v915
      %v917 = vperm.slane %v909, %v916
      %v918 = vrot.slane %v889, 4
      %v919 = vsel %vm846, %v918, %v877
      %v920 = vrot.slane %v877, 4
      %v921 = vsel %vm846, %v889, %v920
      %v923 = vunpack.c.l.s4 1934713408
      %v924 = vunpack.c.0.s8 %v923
      %v925 = vperm.slane %v919, %v924
      %v927 = vunpack.c.l.s4 1934713408
      %v928 = vunpack.c.0.s8 %v927
      %v929 = vperm.slane %v921, %v928
      %v930 = vrot.slane %v893, 4
      %v931 = vsel %vm846, %v930, %v881
      %v932 = vrot.slane %v881, 4
      %v933 = vsel %vm846, %v893, %v932
      %v935 = vunpack.c.l.s4 1934713408
      %v936 = vunpack.c.0.s8 %v935
      %v937 = vperm.slane %v931, %v936
      %v939 = vunpack.c.l.s4 1934713408
      %v940 = vunpack.c.0.s8 %v939
      %v941 = vperm.slane %v933, %v940
      %v942 = vrot.slane %v925, 4
      %v943 = vsel %vm846, %v942, %v901
      %v944 = vrot.slane %v901, 4
      %v945 = vsel %vm846, %v925, %v944
      %v946 = vrot.slane %v929, 4
      %v947 = vsel %vm846, %v946, %v905
      %v948 = vrot.slane %v905, 4
      %v949 = vsel %vm846, %v929, %v948
      %v950 = vrot.slane %v937, 4
      %v951 = vsel %vm846, %v950, %v913
      %v952 = vrot.slane %v913, 4
      %v953 = vsel %vm846, %v937, %v952
      %v954 = vrot.slane %v941, 4
      %v955 = vsel %vm846, %v954, %v917
      %v956 = vrot.slane %v917, 4
      %v957 = vsel %vm846, %v941, %v956
      %v958 = vrot.slane %v512, 4
      %v959 = vsel %vm846, %v958, %v496
      %v960 = vrot.slane %v496, 4
      %v961 = vsel %vm846, %v512, %v960
      %v963 = vunpack.c.l.s4 1983009808
      %v964 = vunpack.c.0.s8 %v963
      %v965 = vperm.slane %v959, %v964
      %v967 = vunpack.c.l.s4 1983009808
      %v968 = vunpack.c.0.s8 %v967
      %v969 = vperm.slane %v961, %v968
      %v970 = vrot.slane %v520, 4
      %v971 = vsel %vm846, %v970, %v504
      %v972 = vrot.slane %v504, 4
      %v973 = vsel %vm846, %v520, %v972
      %v975 = vunpack.c.l.s4 1983009808
      %v976 = vunpack.c.0.s8 %v975
      %v977 = vperm.slane %v971, %v976
      %v979 = vunpack.c.l.s4 1983009808
      %v980 = vunpack.c.0.s8 %v979
      %v981 = vperm.slane %v973, %v980
      %v982 = vrot.slane %v568, 4
      %v983 = vsel %vm846, %v982, %v550
      %v984 = vrot.slane %v550, 4
      %v985 = vsel %vm846, %v568, %v984
      %v987 = vunpack.c.l.s4 1983009808
      %v988 = vunpack.c.0.s8 %v987
      %v989 = vperm.slane %v983, %v988
      %v991 = vunpack.c.l.s4 1983009808
      %v992 = vunpack.c.0.s8 %v991
      %v993 = vperm.slane %v985, %v992
      %v994 = vrot.slane %v577, 4
      %v995 = vsel %vm846, %v994, %v559
      %v996 = vrot.slane %v559, 4
      %v997 = vsel %vm846, %v577, %v996
      %v999 = vunpack.c.l.s4 1983009808
      %v1000 = vunpack.c.0.s8 %v999
      %v1001 = vperm.slane %v995, %v1000
      %v1003 = vunpack.c.l.s4 1983009808
      %v1004 = vunpack.c.0.s8 %v1003
      %v1005 = vperm.slane %v997, %v1004
      %v1006 = vrot.slane %v977, 4
      %v1007 = vsel %vm846, %v1006, %v965
      %v1008 = vrot.slane %v965, 4
      %v1009 = vsel %vm846, %v977, %v1008
      %v1011 = vunpack.c.l.s4 1934713408
      %v1012 = vunpack.c.0.s8 %v1011
      %v1013 = vperm.slane %v1007, %v1012
      %v1015 = vunpack.c.l.s4 1934713408
      %v1016 = vunpack.c.0.s8 %v1015
      %v1017 = vperm.slane %v1009, %v1016
      %v1018 = vrot.slane %v981, 4
      %v1019 = vsel %vm846, %v1018, %v969
      %v1020 = vrot.slane %v969, 4
      %v1021 = vsel %vm846, %v981, %v1020
      %v1023 = vunpack.c.l.s4 1934713408
      %v1024 = vunpack.c.0.s8 %v1023
      %v1025 = vperm.slane %v1019, %v1024
      %v1027 = vunpack.c.l.s4 1934713408
      %v1028 = vunpack.c.0.s8 %v1027
      %v1029 = vperm.slane %v1021, %v1028
      %v1030 = vrot.slane %v1001, 4
      %v1031 = vsel %vm846, %v1030, %v989
      %v1032 = vrot.slane %v989, 4
      %v1033 = vsel %vm846, %v1001, %v1032
      %v1035 = vunpack.c.l.s4 1934713408
      %v1036 = vunpack.c.0.s8 %v1035
      %v1037 = vperm.slane %v1031, %v1036
      %v1039 = vunpack.c.l.s4 1934713408
      %v1040 = vunpack.c.0.s8 %v1039
      %v1041 = vperm.slane %v1033, %v1040
      %v1042 = vrot.slane %v1005, 4
      %v1043 = vsel %vm846, %v1042, %v993
      %v1044 = vrot.slane %v993, 4
      %v1045 = vsel %vm846, %v1005, %v1044
      %v1047 = vunpack.c.l.s4 1934713408
      %v1048 = vunpack.c.0.s8 %v1047
      %v1049 = vperm.slane %v1043, %v1048
      %v1051 = vunpack.c.l.s4 1934713408
      %v1052 = vunpack.c.0.s8 %v1051
      %v1053 = vperm.slane %v1045, %v1052
      %v1054 = vrot.slane %v1037, 4
      %v1055 = vsel %vm846, %v1054, %v1013
      %v1056 = vrot.slane %v1013, 4
      %v1057 = vsel %vm846, %v1037, %v1056
      %v1058 = vrot.slane %v1041, 4
      %v1059 = vsel %vm846, %v1058, %v1017
      %v1060 = vrot.slane %v1017, 4
      %v1061 = vsel %vm846, %v1041, %v1060
      %v1062 = vrot.slane %v1049, 4
      %v1063 = vsel %vm846, %v1062, %v1025
      %v1064 = vrot.slane %v1025, 4
      %v1065 = vsel %vm846, %v1049, %v1064
      %v1066 = vrot.slane %v1053, 4
      %v1067 = vsel %vm846, %v1066, %v1029
      %v1068 = vrot.slane %v1029, 4
      %v1069 = vsel %vm846, %v1053, %v1068
      %v1070 = vrot.slane %v617, 4
      %v1071 = vsel %vm846, %v1070, %v601
      %v1072 = vrot.slane %v601, 4
      %v1073 = vsel %vm846, %v617, %v1072
      %v1075 = vunpack.c.l.s4 1983009808
      %v1076 = vunpack.c.0.s8 %v1075
      %v1077 = vperm.slane %v1071, %v1076
      %v1079 = vunpack.c.l.s4 1983009808
      %v1080 = vunpack.c.0.s8 %v1079
      %v1081 = vperm.slane %v1073, %v1080
      %v1082 = vrot.slane %v625, 4
      %v1083 = vsel %vm846, %v1082, %v609
      %v1084 = vrot.slane %v609, 4
      %v1085 = vsel %vm846, %v625, %v1084
      %v1087 = vunpack.c.l.s4 1983009808
      %v1088 = vunpack.c.0.s8 %v1087
      %v1089 = vperm.slane %v1083, %v1088
      %v1091 = vunpack.c.l.s4 1983009808
      %v1092 = vunpack.c.0.s8 %v1091
      %v1093 = vperm.slane %v1085, %v1092
      %v1094 = vrot.slane %v665, 4
      %v1095 = vsel %vm846, %v1094, %v649
      %v1096 = vrot.slane %v649, 4
      %v1097 = vsel %vm846, %v665, %v1096
      %v1099 = vunpack.c.l.s4 1983009808
      %v1100 = vunpack.c.0.s8 %v1099
      %v1101 = vperm.slane %v1095, %v1100
      %v1103 = vunpack.c.l.s4 1983009808
      %v1104 = vunpack.c.0.s8 %v1103
      %v1105 = vperm.slane %v1097, %v1104
      %v1106 = vrot.slane %v673, 4
      %v1107 = vsel %vm846, %v1106, %v657
      %v1108 = vrot.slane %v657, 4
      %v1109 = vsel %vm846, %v673, %v1108
      %v1111 = vunpack.c.l.s4 1983009808
      %v1112 = vunpack.c.0.s8 %v1111
      %v1113 = vperm.slane %v1107, %v1112
      %v1115 = vunpack.c.l.s4 1983009808
      %v1116 = vunpack.c.0.s8 %v1115
      %v1117 = vperm.slane %v1109, %v1116
      %v1118 = vrot.slane %v1089, 4
      %v1119 = vsel %vm846, %v1118, %v1077
      %v1120 = vrot.slane %v1077, 4
      %v1121 = vsel %vm846, %v1089, %v1120
      %v1123 = vunpack.c.l.s4 1934713408
      %v1124 = vunpack.c.0.s8 %v1123
      %v1125 = vperm.slane %v1119, %v1124
      %v1127 = vunpack.c.l.s4 1934713408
      %v1128 = vunpack.c.0.s8 %v1127
      %v1129 = vperm.slane %v1121, %v1128
      %v1130 = vrot.slane %v1093, 4
      %v1131 = vsel %vm846, %v1130, %v1081
      %v1132 = vrot.slane %v1081, 4
      %v1133 = vsel %vm846, %v1093, %v1132
      %v1135 = vunpack.c.l.s4 1934713408
      %v1136 = vunpack.c.0.s8 %v1135
      %v1137 = vperm.slane %v1131, %v1136
      %v1139 = vunpack.c.l.s4 1934713408
      %v1140 = vunpack.c.0.s8 %v1139
      %v1141 = vperm.slane %v1133, %v1140
      %v1142 = vrot.slane %v1113, 4
      %v1143 = vsel %vm846, %v1142, %v1101
      %v1144 = vrot.slane %v1101, 4
      %v1145 = vsel %vm846, %v1113, %v1144
      %v1147 = vunpack.c.l.s4 1934713408
      %v1148 = vunpack.c.0.s8 %v1147
      %v1149 = vperm.slane %v1143, %v1148
      %v1151 = vunpack.c.l.s4 1934713408
      %v1152 = vunpack.c.0.s8 %v1151
      %v1153 = vperm.slane %v1145, %v1152
      %v1154 = vrot.slane %v1117, 4
      %v1155 = vsel %vm846, %v1154, %v1105
      %v1156 = vrot.slane %v1105, 4
      %v1157 = vsel %vm846, %v1117, %v1156
      %v1159 = vunpack.c.l.s4 1934713408
      %v1160 = vunpack.c.0.s8 %v1159
      %v1161 = vperm.slane %v1155, %v1160
      %v1163 = vunpack.c.l.s4 1934713408
      %v1164 = vunpack.c.0.s8 %v1163
      %v1165 = vperm.slane %v1157, %v1164
      %v1166 = vrot.slane %v1149, 4
      %v1167 = vsel %vm846, %v1166, %v1125
      %v1168 = vrot.slane %v1125, 4
      %v1169 = vsel %vm846, %v1149, %v1168
      %v1170 = vrot.slane %v1153, 4
      %v1171 = vsel %vm846, %v1170, %v1129
      %v1172 = vrot.slane %v1129, 4
      %v1173 = vsel %vm846, %v1153, %v1172
      %v1174 = vrot.slane %v1161, 4
      %v1175 = vsel %vm846, %v1174, %v1137
      %v1176 = vrot.slane %v1137, 4
      %v1177 = vsel %vm846, %v1161, %v1176
      %v1178 = vrot.slane %v1165, 4
      %v1179 = vsel %vm846, %v1178, %v1141
      %v1180 = vrot.slane %v1141, 4
      %v1181 = vsel %vm846, %v1165, %v1180
      %v1182 = vrot.slane %v717, 4
      %v1183 = vsel %vm846, %v1182, %v699
      %v1184 = vrot.slane %v699, 4
      %v1185 = vsel %vm846, %v717, %v1184
      %v1187 = vunpack.c.l.s4 1983009808
      %v1188 = vunpack.c.0.s8 %v1187
      %v1189 = vperm.slane %v1183, %v1188
      %v1191 = vunpack.c.l.s4 1983009808
      %v1192 = vunpack.c.0.s8 %v1191
      %v1193 = vperm.slane %v1185, %v1192
      %v1194 = vrot.slane %v726, 4
      %v1195 = vsel %vm846, %v1194, %v708
      %v1196 = vrot.slane %v708, 4
      %v1197 = vsel %vm846, %v726, %v1196
      %v1199 = vunpack.c.l.s4 1983009808
      %v1200 = vunpack.c.0.s8 %v1199
      %v1201 = vperm.slane %v1195, %v1200
      %v1203 = vunpack.c.l.s4 1983009808
      %v1204 = vunpack.c.0.s8 %v1203
      %v1205 = vperm.slane %v1197, %v1204
      %v1206 = vrot.slane %v766, 4
      %v1207 = vsel %vm846, %v1206, %v750
      %v1208 = vrot.slane %v750, 4
      %v1209 = vsel %vm846, %v766, %v1208
      %v1211 = vunpack.c.l.s4 1983009808
      %v1212 = vunpack.c.0.s8 %v1211
      %v1213 = vperm.slane %v1207, %v1212
      %v1215 = vunpack.c.l.s4 1983009808
      %v1216 = vunpack.c.0.s8 %v1215
      %v1217 = vperm.slane %v1209, %v1216
      %v1218 = vrot.slane %v774, 4
      %v1219 = vsel %vm846, %v1218, %v758
      %v1220 = vrot.slane %v758, 4
      %v1221 = vsel %vm846, %v774, %v1220
      %v1223 = vunpack.c.l.s4 1983009808
      %v1224 = vunpack.c.0.s8 %v1223
      %v1225 = vperm.slane %v1219, %v1224
      %v1227 = vunpack.c.l.s4 1983009808
      %v1228 = vunpack.c.0.s8 %v1227
      %v1229 = vperm.slane %v1221, %v1228
      %v1230 = vrot.slane %v1201, 4
      %v1231 = vsel %vm846, %v1230, %v1189
      %v1232 = vrot.slane %v1189, 4
      %v1233 = vsel %vm846, %v1201, %v1232
      %v1235 = vunpack.c.l.s4 1934713408
      %v1236 = vunpack.c.0.s8 %v1235
      %v1237 = vperm.slane %v1231, %v1236
      %v1239 = vunpack.c.l.s4 1934713408
      %v1240 = vunpack.c.0.s8 %v1239
      %v1241 = vperm.slane %v1233, %v1240
      %v1242 = vrot.slane %v1205, 4
      %v1243 = vsel %vm846, %v1242, %v1193
      %v1244 = vrot.slane %v1193, 4
      %v1245 = vsel %vm846, %v1205, %v1244
      %v1247 = vunpack.c.l.s4 1934713408
      %v1248 = vunpack.c.0.s8 %v1247
      %v1249 = vperm.slane %v1243, %v1248
      %v1251 = vunpack.c.l.s4 1934713408
      %v1252 = vunpack.c.0.s8 %v1251
      %v1253 = vperm.slane %v1245, %v1252
      %v1254 = vrot.slane %v1225, 4
      %v1255 = vsel %vm846, %v1254, %v1213
      %v1256 = vrot.slane %v1213, 4
      %v1257 = vsel %vm846, %v1225, %v1256
      %v1259 = vunpack.c.l.s4 1934713408
      %v1260 = vunpack.c.0.s8 %v1259
      %v1261 = vperm.slane %v1255, %v1260
      %v1263 = vunpack.c.l.s4 1934713408
      %v1264 = vunpack.c.0.s8 %v1263
      %v1265 = vperm.slane %v1257, %v1264
      %v1266 = vrot.slane %v1229, 4
      %v1267 = vsel %vm846, %v1266, %v1217
      %v1268 = vrot.slane %v1217, 4
      %v1269 = vsel %vm846, %v1229, %v1268
      %v1271 = vunpack.c.l.s4 1934713408
      %v1272 = vunpack.c.0.s8 %v1271
      %v1273 = vperm.slane %v1267, %v1272
      %v1275 = vunpack.c.l.s4 1934713408
      %v1276 = vunpack.c.0.s8 %v1275
      %v1277 = vperm.slane %v1269, %v1276
      %v1278 = vrot.slane %v1261, 4
      %v1279 = vsel %vm846, %v1278, %v1237
      %v1280 = vrot.slane %v1237, 4
      %v1281 = vsel %vm846, %v1261, %v1280
      %v1282 = vrot.slane %v1265, 4
      %v1283 = vsel %vm846, %v1282, %v1241
      %v1284 = vrot.slane %v1241, 4
      %v1285 = vsel %vm846, %v1265, %v1284
      %v1286 = vrot.slane %v1273, 4
      %v1287 = vsel %vm846, %v1286, %v1249
      %v1288 = vrot.slane %v1249, 4
      %v1289 = vsel %vm846, %v1273, %v1288
      %v1290 = vrot.slane %v1277, 4
      %v1291 = vsel %vm846, %v1290, %v1253
      %v1292 = vrot.slane %v1253, 4
      %v1293 = vsel %vm846, %v1277, %v1292
      %v1294 = vrot.slane %v814, 4
      %v1295 = vsel %vm846, %v1294, %v798
      %v1296 = vrot.slane %v798, 4
      %v1297 = vsel %vm846, %v814, %v1296
      %v1299 = vunpack.c.l.s4 1983009808
      %v1300 = vunpack.c.0.s8 %v1299
      %v1301 = vperm.slane %v1295, %v1300
      %v1303 = vunpack.c.l.s4 1983009808
      %v1304 = vunpack.c.0.s8 %v1303
      %v1305 = vperm.slane %v1297, %v1304
      %v1306 = vrot.slane %v822, 4
      %v1307 = vsel %vm846, %v1306, %v806
      %v1308 = vrot.slane %v806, 4
      %v1309 = vsel %vm846, %v822, %v1308
      %v1311 = vunpack.c.l.s4 1983009808
      %v1312 = vunpack.c.0.s8 %v1311
      %v1313 = vperm.slane %v1307, %v1312
      %v1315 = vunpack.c.l.s4 1983009808
      %v1316 = vunpack.c.0.s8 %v1315
      %v1317 = vperm.slane %v1309, %v1316
      %v1318 = vrot.slane %v1313, 4
      %v1319 = vsel %vm846, %v1318, %v1301
      %v1320 = vrot.slane %v1301, 4
      %v1321 = vsel %vm846, %v1313, %v1320
      %v1323 = vunpack.c.l.s4 1934713408
      %v1324 = vunpack.c.0.s8 %v1323
      %v1325 = vperm.slane %v1319, %v1324
      %v1327 = vunpack.c.l.s4 1934713408
      %v1328 = vunpack.c.0.s8 %v1327
      %v1329 = vperm.slane %v1321, %v1328
      %v1330 = vrot.slane %v1317, 4
      %v1331 = vsel %vm846, %v1330, %v1305
      %v1332 = vrot.slane %v1305, 4
      %v1333 = vsel %vm846, %v1317, %v1332
      %v1335 = vunpack.c.l.s4 1934713408
      %v1336 = vunpack.c.0.s8 %v1335
      %v1337 = vperm.slane %v1331, %v1336
      %v1339 = vunpack.c.l.s4 1934713408
      %v1340 = vunpack.c.0.s8 %v1339
      %v1341 = vperm.slane %v1333, %v1340
      %v1342 = vrot.slane %v1325, 4
      %v1343 = vsel %vm846, 0.0, %v1342
      %v1344 = vrot.slane %v1329, 4
      %v1345 = vsel %vm846, 0.0, %v1344
      %v1346 = vrot.slane %v1337, 4
      %v1347 = vsel %vm846, 0.0, %v1346
      %v1348 = vrot.slane %v1341, 4
      %v1349 = vsel %vm846, 0.0, %v1348
      %v1350 = vrot.slane %v388, 4
      %v1351 = vsel %vm846, %v1350, %v324
      %v1352 = vrot.slane %v324, 4
      %v1353 = vsel %vm846, %v388, %v1352
      %v1355 = vunpack.c.l.s4 1983009808
      %v1356 = vunpack.c.0.s8 %v1355
      %v1357 = vperm.slane %v1351, %v1356
      %v1359 = vunpack.c.l.s4 1983009808
      %v1360 = vunpack.c.0.s8 %v1359
      %v1361 = vperm.slane %v1353, %v1360
      %v1362 = vrot.slane %v420, 4
      %v1363 = vsel %vm846, %v1362, %v356
      %v1364 = vrot.slane %v356, 4
      %v1365 = vsel %vm846, %v420, %v1364
      %v1367 = vunpack.c.l.s4 1983009808
      %v1368 = vunpack.c.0.s8 %v1367
      %v1369 = vperm.slane %v1363, %v1368
      %v1371 = vunpack.c.l.s4 1983009808
      %v1372 = vunpack.c.0.s8 %v1371
      %v1373 = vperm.slane %v1365, %v1372
      %v1374 = vrot.slane %v466, 4
      %v1375 = vsel %vm846, %v1374, %v450
      %v1376 = vrot.slane %v450, 4
      %v1377 = vsel %vm846, %v466, %v1376
      %v1379 = vunpack.c.l.s4 1983009808
      %v1380 = vunpack.c.0.s8 %v1379
      %v1381 = vperm.slane %v1375, %v1380
      %v1383 = vunpack.c.l.s4 1983009808
      %v1384 = vunpack.c.0.s8 %v1383
      %v1385 = vperm.slane %v1377, %v1384
      %v1386 = vrot.slane %v474, 4
      %v1387 = vsel %vm846, %v1386, %v458
      %v1388 = vrot.slane %v458, 4
      %v1389 = vsel %vm846, %v474, %v1388
      %v1391 = vunpack.c.l.s4 1983009808
      %v1392 = vunpack.c.0.s8 %v1391
      %v1393 = vperm.slane %v1387, %v1392
      %v1395 = vunpack.c.l.s4 1983009808
      %v1396 = vunpack.c.0.s8 %v1395
      %v1397 = vperm.slane %v1389, %v1396
      %v1398 = vrot.slane %v1369, 4
      %v1399 = vsel %vm846, %v1398, %v1357
      %v1400 = vrot.slane %v1357, 4
      %v1401 = vsel %vm846, %v1369, %v1400
      %v1403 = vunpack.c.l.s4 1934713408
      %v1404 = vunpack.c.0.s8 %v1403
      %v1405 = vperm.slane %v1399, %v1404
      %v1407 = vunpack.c.l.s4 1934713408
      %v1408 = vunpack.c.0.s8 %v1407
      %v1409 = vperm.slane %v1401, %v1408
      %v1410 = vrot.slane %v1373, 4
      %v1411 = vsel %vm846, %v1410, %v1361
      %v1412 = vrot.slane %v1361, 4
      %v1413 = vsel %vm846, %v1373, %v1412
      %v1415 = vunpack.c.l.s4 1934713408
      %v1416 = vunpack.c.0.s8 %v1415
      %v1417 = vperm.slane %v1411, %v1416
      %v1419 = vunpack.c.l.s4 1934713408
      %v1420 = vunpack.c.0.s8 %v1419
      %v1421 = vperm.slane %v1413, %v1420
      %v1422 = vrot.slane %v1393, 4
      %v1423 = vsel %vm846, %v1422, %v1381
      %v1424 = vrot.slane %v1381, 4
      %v1425 = vsel %vm846, %v1393, %v1424
      %v1427 = vunpack.c.l.s4 1934713408
      %v1428 = vunpack.c.0.s8 %v1427
      %v1429 = vperm.slane %v1423, %v1428
      %v1431 = vunpack.c.l.s4 1934713408
      %v1432 = vunpack.c.0.s8 %v1431
      %v1433 = vperm.slane %v1425, %v1432
      %v1434 = vrot.slane %v1397, 4
      %v1435 = vsel %vm846, %v1434, %v1385
      %v1436 = vrot.slane %v1385, 4
      %v1437 = vsel %vm846, %v1397, %v1436
      %v1439 = vunpack.c.l.s4 1934713408
      %v1440 = vunpack.c.0.s8 %v1439
      %v1441 = vperm.slane %v1435, %v1440
      %v1443 = vunpack.c.l.s4 1934713408
      %v1444 = vunpack.c.0.s8 %v1443
      %v1445 = vperm.slane %v1437, %v1444
      %v1446 = vrot.slane %v1429, 4
      %v1447 = vsel %vm846, %v1446, %v1405
      %v1448 = vrot.slane %v1405, 4
      %v1449 = vsel %vm846, %v1429, %v1448
      %v1450 = vrot.slane %v1433, 4
      %v1451 = vsel %vm846, %v1450, %v1409
      %v1452 = vrot.slane %v1409, 4
      %v1453 = vsel %vm846, %v1433, %v1452
      %v1454 = vrot.slane %v1441, 4
      %v1455 = vsel %vm846, %v1454, %v1417
      %v1456 = vrot.slane %v1417, 4
      %v1457 = vsel %vm846, %v1441, %v1456
      %v1458 = vrot.slane %v1445, 4
      %v1459 = vsel %vm846, %v1458, %v1421
      %v1460 = vrot.slane %v1421, 4
      %v1461 = vsel %vm846, %v1445, %v1460
      %v1462 = vrot.slane %v514, 4
      %v1463 = vsel %vm846, %v1462, %v498
      %v1464 = vrot.slane %v498, 4
      %v1465 = vsel %vm846, %v514, %v1464
      %v1467 = vunpack.c.l.s4 1983009808
      %v1468 = vunpack.c.0.s8 %v1467
      %v1469 = vperm.slane %v1463, %v1468
      %v1471 = vunpack.c.l.s4 1983009808
      %v1472 = vunpack.c.0.s8 %v1471
      %v1473 = vperm.slane %v1465, %v1472
      %v1474 = vrot.slane %v522, 4
      %v1475 = vsel %vm846, %v1474, %v506
      %v1476 = vrot.slane %v506, 4
      %v1477 = vsel %vm846, %v522, %v1476
      %v1479 = vunpack.c.l.s4 1983009808
      %v1480 = vunpack.c.0.s8 %v1479
      %v1481 = vperm.slane %v1475, %v1480
      %v1483 = vunpack.c.l.s4 1983009808
      %v1484 = vunpack.c.0.s8 %v1483
      %v1485 = vperm.slane %v1477, %v1484
      %v1486 = vrot.slane %v570, 4
      %v1487 = vsel %vm846, %v1486, %v552
      %v1488 = vrot.slane %v552, 4
      %v1489 = vsel %vm846, %v570, %v1488
      %v1491 = vunpack.c.l.s4 1983009808
      %v1492 = vunpack.c.0.s8 %v1491
      %v1493 = vperm.slane %v1487, %v1492
      %v1495 = vunpack.c.l.s4 1983009808
      %v1496 = vunpack.c.0.s8 %v1495
      %v1497 = vperm.slane %v1489, %v1496
      %v1498 = vrot.slane %v579, 4
      %v1499 = vsel %vm846, %v1498, %v561
      %v1500 = vrot.slane %v561, 4
      %v1501 = vsel %vm846, %v579, %v1500
      %v1503 = vunpack.c.l.s4 1983009808
      %v1504 = vunpack.c.0.s8 %v1503
      %v1505 = vperm.slane %v1499, %v1504
      %v1507 = vunpack.c.l.s4 1983009808
      %v1508 = vunpack.c.0.s8 %v1507
      %v1509 = vperm.slane %v1501, %v1508
      %v1510 = vrot.slane %v1481, 4
      %v1511 = vsel %vm846, %v1510, %v1469
      %v1512 = vrot.slane %v1469, 4
      %v1513 = vsel %vm846, %v1481, %v1512
      %v1515 = vunpack.c.l.s4 1934713408
      %v1516 = vunpack.c.0.s8 %v1515
      %v1517 = vperm.slane %v1511, %v1516
      %v1519 = vunpack.c.l.s4 1934713408
      %v1520 = vunpack.c.0.s8 %v1519
      %v1521 = vperm.slane %v1513, %v1520
      %v1522 = vrot.slane %v1485, 4
      %v1523 = vsel %vm846, %v1522, %v1473
      %v1524 = vrot.slane %v1473, 4
      %v1525 = vsel %vm846, %v1485, %v1524
      %v1527 = vunpack.c.l.s4 1934713408
      %v1528 = vunpack.c.0.s8 %v1527
      %v1529 = vperm.slane %v1523, %v1528
      %v1531 = vunpack.c.l.s4 1934713408
      %v1532 = vunpack.c.0.s8 %v1531
      %v1533 = vperm.slane %v1525, %v1532
      %v1534 = vrot.slane %v1505, 4
      %v1535 = vsel %vm846, %v1534, %v1493
      %v1536 = vrot.slane %v1493, 4
      %v1537 = vsel %vm846, %v1505, %v1536
      %v1539 = vunpack.c.l.s4 1934713408
      %v1540 = vunpack.c.0.s8 %v1539
      %v1541 = vperm.slane %v1535, %v1540
      %v1543 = vunpack.c.l.s4 1934713408
      %v1544 = vunpack.c.0.s8 %v1543
      %v1545 = vperm.slane %v1537, %v1544
      %v1546 = vrot.slane %v1509, 4
      %v1547 = vsel %vm846, %v1546, %v1497
      %v1548 = vrot.slane %v1497, 4
      %v1549 = vsel %vm846, %v1509, %v1548
      %v1551 = vunpack.c.l.s4 1934713408
      %v1552 = vunpack.c.0.s8 %v1551
      %v1553 = vperm.slane %v1547, %v1552
      %v1555 = vunpack.c.l.s4 1934713408
      %v1556 = vunpack.c.0.s8 %v1555
      %v1557 = vperm.slane %v1549, %v1556
      %v1558 = vrot.slane %v1541, 4
      %v1559 = vsel %vm846, %v1558, %v1517
      %v1560 = vrot.slane %v1517, 4
      %v1561 = vsel %vm846, %v1541, %v1560
      %v1562 = vrot.slane %v1545, 4
      %v1563 = vsel %vm846, %v1562, %v1521
      %v1564 = vrot.slane %v1521, 4
      %v1565 = vsel %vm846, %v1545, %v1564
      %v1566 = vrot.slane %v1553, 4
      %v1567 = vsel %vm846, %v1566, %v1529
      %v1568 = vrot.slane %v1529, 4
      %v1569 = vsel %vm846, %v1553, %v1568
      %v1570 = vrot.slane %v1557, 4
      %v1571 = vsel %vm846, %v1570, %v1533
      %v1572 = vrot.slane %v1533, 4
      %v1573 = vsel %vm846, %v1557, %v1572
      %v1574 = vrot.slane %v619, 4
      %v1575 = vsel %vm846, %v1574, %v603
      %v1576 = vrot.slane %v603, 4
      %v1577 = vsel %vm846, %v619, %v1576
      %v1579 = vunpack.c.l.s4 1983009808
      %v1580 = vunpack.c.0.s8 %v1579
      %v1581 = vperm.slane %v1575, %v1580
      %v1583 = vunpack.c.l.s4 1983009808
      %v1584 = vunpack.c.0.s8 %v1583
      %v1585 = vperm.slane %v1577, %v1584
      %v1586 = vrot.slane %v627, 4
      %v1587 = vsel %vm846, %v1586, %v611
      %v1588 = vrot.slane %v611, 4
      %v1589 = vsel %vm846, %v627, %v1588
      %v1591 = vunpack.c.l.s4 1983009808
      %v1592 = vunpack.c.0.s8 %v1591
      %v1593 = vperm.slane %v1587, %v1592
      %v1595 = vunpack.c.l.s4 1983009808
      %v1596 = vunpack.c.0.s8 %v1595
      %v1597 = vperm.slane %v1589, %v1596
      %v1598 = vrot.slane %v667, 4
      %v1599 = vsel %vm846, %v1598, %v651
      %v1600 = vrot.slane %v651, 4
      %v1601 = vsel %vm846, %v667, %v1600
      %v1603 = vunpack.c.l.s4 1983009808
      %v1604 = vunpack.c.0.s8 %v1603
      %v1605 = vperm.slane %v1599, %v1604
      %v1607 = vunpack.c.l.s4 1983009808
      %v1608 = vunpack.c.0.s8 %v1607
      %v1609 = vperm.slane %v1601, %v1608
      %v1610 = vrot.slane %v675, 4
      %v1611 = vsel %vm846, %v1610, %v659
      %v1612 = vrot.slane %v659, 4
      %v1613 = vsel %vm846, %v675, %v1612
      %v1615 = vunpack.c.l.s4 1983009808
      %v1616 = vunpack.c.0.s8 %v1615
      %v1617 = vperm.slane %v1611, %v1616
      %v1619 = vunpack.c.l.s4 1983009808
      %v1620 = vunpack.c.0.s8 %v1619
      %v1621 = vperm.slane %v1613, %v1620
      %v1622 = vrot.slane %v1593, 4
      %v1623 = vsel %vm846, %v1622, %v1581
      %v1624 = vrot.slane %v1581, 4
      %v1625 = vsel %vm846, %v1593, %v1624
      %v1627 = vunpack.c.l.s4 1934713408
      %v1628 = vunpack.c.0.s8 %v1627
      %v1629 = vperm.slane %v1623, %v1628
      %v1631 = vunpack.c.l.s4 1934713408
      %v1632 = vunpack.c.0.s8 %v1631
      %v1633 = vperm.slane %v1625, %v1632
      %v1634 = vrot.slane %v1597, 4
      %v1635 = vsel %vm846, %v1634, %v1585
      %v1636 = vrot.slane %v1585, 4
      %v1637 = vsel %vm846, %v1597, %v1636
      %v1639 = vunpack.c.l.s4 1934713408
      %v1640 = vunpack.c.0.s8 %v1639
      %v1641 = vperm.slane %v1635, %v1640
      %v1643 = vunpack.c.l.s4 1934713408
      %v1644 = vunpack.c.0.s8 %v1643
      %v1645 = vperm.slane %v1637, %v1644
      %v1646 = vrot.slane %v1617, 4
      %v1647 = vsel %vm846, %v1646, %v1605
      %v1648 = vrot.slane %v1605, 4
      %v1649 = vsel %vm846, %v1617, %v1648
      %v1651 = vunpack.c.l.s4 1934713408
      %v1652 = vunpack.c.0.s8 %v1651
      %v1653 = vperm.slane %v1647, %v1652
      %v1655 = vunpack.c.l.s4 1934713408
      %v1656 = vunpack.c.0.s8 %v1655
      %v1657 = vperm.slane %v1649, %v1656
      %v1658 = vrot.slane %v1621, 4
      %v1659 = vsel %vm846, %v1658, %v1609
      %v1660 = vrot.slane %v1609, 4
      %v1661 = vsel %vm846, %v1621, %v1660
      %v1663 = vunpack.c.l.s4 1934713408
      %v1664 = vunpack.c.0.s8 %v1663
      %v1665 = vperm.slane %v1659, %v1664
      %v1667 = vunpack.c.l.s4 1934713408
      %v1668 = vunpack.c.0.s8 %v1667
      %v1669 = vperm.slane %v1661, %v1668
      %v1670 = vrot.slane %v1653, 4
      %v1671 = vsel %vm846, %v1670, %v1629
      %v1672 = vrot.slane %v1629, 4
      %v1673 = vsel %vm846, %v1653, %v1672
      %v1674 = vrot.slane %v1657, 4
      %v1675 = vsel %vm846, %v1674, %v1633
      %v1676 = vrot.slane %v1633, 4
      %v1677 = vsel %vm846, %v1657, %v1676
      %v1678 = vrot.slane %v1665, 4
      %v1679 = vsel %vm846, %v1678, %v1641
      %v1680 = vrot.slane %v1641, 4
      %v1681 = vsel %vm846, %v1665, %v1680
      %v1682 = vrot.slane %v1669, 4
      %v1683 = vsel %vm846, %v1682, %v1645
      %v1684 = vrot.slane %v1645, 4
      %v1685 = vsel %vm846, %v1669, %v1684
      %v1686 = vrot.slane %v719, 4
      %v1687 = vsel %vm846, %v1686, %v701
      %v1688 = vrot.slane %v701, 4
      %v1689 = vsel %vm846, %v719, %v1688
      %v1691 = vunpack.c.l.s4 1983009808
      %v1692 = vunpack.c.0.s8 %v1691
      %v1693 = vperm.slane %v1687, %v1692
      %v1695 = vunpack.c.l.s4 1983009808
      %v1696 = vunpack.c.0.s8 %v1695
      %v1697 = vperm.slane %v1689, %v1696
      %v1698 = vrot.slane %v728, 4
      %v1699 = vsel %vm846, %v1698, %v710
      %v1700 = vrot.slane %v710, 4
      %v1701 = vsel %vm846, %v728, %v1700
      %v1703 = vunpack.c.l.s4 1983009808
      %v1704 = vunpack.c.0.s8 %v1703
      %v1705 = vperm.slane %v1699, %v1704
      %v1707 = vunpack.c.l.s4 1983009808
      %v1708 = vunpack.c.0.s8 %v1707
      %v1709 = vperm.slane %v1701, %v1708
      %v1710 = vrot.slane %v768, 4
      %v1711 = vsel %vm846, %v1710, %v752
      %v1712 = vrot.slane %v752, 4
      %v1713 = vsel %vm846, %v768, %v1712
      %v1715 = vunpack.c.l.s4 1983009808
      %v1716 = vunpack.c.0.s8 %v1715
      %v1717 = vperm.slane %v1711, %v1716
      %v1719 = vunpack.c.l.s4 1983009808
      %v1720 = vunpack.c.0.s8 %v1719
      %v1721 = vperm.slane %v1713, %v1720
      %v1722 = vrot.slane %v776, 4
      %v1723 = vsel %vm846, %v1722, %v760
      %v1724 = vrot.slane %v760, 4
      %v1725 = vsel %vm846, %v776, %v1724
      %v1727 = vunpack.c.l.s4 1983009808
      %v1728 = vunpack.c.0.s8 %v1727
      %v1729 = vperm.slane %v1723, %v1728
      %v1731 = vunpack.c.l.s4 1983009808
      %v1732 = vunpack.c.0.s8 %v1731
      %v1733 = vperm.slane %v1725, %v1732
      %v1734 = vrot.slane %v1705, 4
      %v1735 = vsel %vm846, %v1734, %v1693
      %v1736 = vrot.slane %v1693, 4
      %v1737 = vsel %vm846, %v1705, %v1736
      %v1739 = vunpack.c.l.s4 1934713408
      %v1740 = vunpack.c.0.s8 %v1739
      %v1741 = vperm.slane %v1735, %v1740
      %v1743 = vunpack.c.l.s4 1934713408
      %v1744 = vunpack.c.0.s8 %v1743
      %v1745 = vperm.slane %v1737, %v1744
      %v1746 = vrot.slane %v1709, 4
      %v1747 = vsel %vm846, %v1746, %v1697
      %v1748 = vrot.slane %v1697, 4
      %v1749 = vsel %vm846, %v1709, %v1748
      %v1751 = vunpack.c.l.s4 1934713408
      %v1752 = vunpack.c.0.s8 %v1751
      %v1753 = vperm.slane %v1747, %v1752
      %v1755 = vunpack.c.l.s4 1934713408
      %v1756 = vunpack.c.0.s8 %v1755
      %v1757 = vperm.slane %v1749, %v1756
      %v1758 = vrot.slane %v1729, 4
      %v1759 = vsel %vm846, %v1758, %v1717
      %v1760 = vrot.slane %v1717, 4
      %v1761 = vsel %vm846, %v1729, %v1760
      %v1763 = vunpack.c.l.s4 1934713408
      %v1764 = vunpack.c.0.s8 %v1763
      %v1765 = vperm.slane %v1759, %v1764
      %v1767 = vunpack.c.l.s4 1934713408
      %v1768 = vunpack.c.0.s8 %v1767
      %v1769 = vperm.slane %v1761, %v1768
      %v1770 = vrot.slane %v1733, 4
      %v1771 = vsel %vm846, %v1770, %v1721
      %v1772 = vrot.slane %v1721, 4
      %v1773 = vsel %vm846, %v1733, %v1772
      %v1775 = vunpack.c.l.s4 1934713408
      %v1776 = vunpack.c.0.s8 %v1775
      %v1777 = vperm.slane %v1771, %v1776
      %v1779 = vunpack.c.l.s4 1934713408
      %v1780 = vunpack.c.0.s8 %v1779
      %v1781 = vperm.slane %v1773, %v1780
      %v1782 = vrot.slane %v1765, 4
      %v1783 = vsel %vm846, %v1782, %v1741
      %v1784 = vrot.slane %v1741, 4
      %v1785 = vsel %vm846, %v1765, %v1784
      %v1786 = vrot.slane %v1769, 4
      %v1787 = vsel %vm846, %v1786, %v1745
      %v1788 = vrot.slane %v1745, 4
      %v1789 = vsel %vm846, %v1769, %v1788
      %v1790 = vrot.slane %v1777, 4
      %v1791 = vsel %vm846, %v1790, %v1753
      %v1792 = vrot.slane %v1753, 4
      %v1793 = vsel %vm846, %v1777, %v1792
      %v1794 = vrot.slane %v1781, 4
      %v1795 = vsel %vm846, %v1794, %v1757
      %v1796 = vrot.slane %v1757, 4
      %v1797 = vsel %vm846, %v1781, %v1796
      %v1798 = vrot.slane %v816, 4
      %v1799 = vsel %vm846, %v1798, %v800
      %v1800 = vrot.slane %v800, 4
      %v1801 = vsel %vm846, %v816, %v1800
      %v1803 = vunpack.c.l.s4 1983009808
      %v1804 = vunpack.c.0.s8 %v1803
      %v1805 = vperm.slane %v1799, %v1804
      %v1807 = vunpack.c.l.s4 1983009808
      %v1808 = vunpack.c.0.s8 %v1807
      %v1809 = vperm.slane %v1801, %v1808
      %v1810 = vrot.slane %v824, 4
      %v1811 = vsel %vm846, %v1810, %v808
      %v1812 = vrot.slane %v808, 4
      %v1813 = vsel %vm846, %v824, %v1812
      %v1815 = vunpack.c.l.s4 1983009808
      %v1816 = vunpack.c.0.s8 %v1815
      %v1817 = vperm.slane %v1811, %v1816
      %v1819 = vunpack.c.l.s4 1983009808
      %v1820 = vunpack.c.0.s8 %v1819
      %v1821 = vperm.slane %v1813, %v1820
      %v1822 = vrot.slane %v1817, 4
      %v1823 = vsel %vm846, %v1822, %v1805
      %v1824 = vrot.slane %v1805, 4
      %v1825 = vsel %vm846, %v1817, %v1824
      %v1827 = vunpack.c.l.s4 1934713408
      %v1828 = vunpack.c.0.s8 %v1827
      %v1829 = vperm.slane %v1823, %v1828
      %v1831 = vunpack.c.l.s4 1934713408
      %v1832 = vunpack.c.0.s8 %v1831
      %v1833 = vperm.slane %v1825, %v1832
      %v1834 = vrot.slane %v1821, 4
      %v1835 = vsel %vm846, %v1834, %v1809
      %v1836 = vrot.slane %v1809, 4
      %v1837 = vsel %vm846, %v1821, %v1836
      %v1839 = vunpack.c.l.s4 1934713408
      %v1840 = vunpack.c.0.s8 %v1839
      %v1841 = vperm.slane %v1835, %v1840
      %v1843 = vunpack.c.l.s4 1934713408
      %v1844 = vunpack.c.0.s8 %v1843
      %v1845 = vperm.slane %v1837, %v1844
      %v1846 = vrot.slane %v1829, 4
      %v1847 = vsel %vm846, 0.0, %v1846
      %v1848 = vrot.slane %v1833, 4
      %v1849 = vsel %vm846, 0.0, %v1848
      %v1850 = vrot.slane %v1841, 4
      %v1851 = vsel %vm846, 0.0, %v1850
      %v1852 = vrot.slane %v1845, 4
      %v1853 = vsel %vm846, 0.0, %v1852
      %v1854 = vrot.slane %v391, 4
      %v1855 = vsel %vm846, %v1854, %v327
      %v1856 = vrot.slane %v327, 4
      %v1857 = vsel %vm846, %v391, %v1856
      %v1859 = vunpack.c.l.s4 1983009808
      %v1860 = vunpack.c.0.s8 %v1859
      %v1861 = vperm.slane %v1855, %v1860
      %v1863 = vunpack.c.l.s4 1983009808
      %v1864 = vunpack.c.0.s8 %v1863
      %v1865 = vperm.slane %v1857, %v1864
      %v1866 = vrot.slane %v423, 4
      %v1867 = vsel %vm846, %v1866, %v359
      %v1868 = vrot.slane %v359, 4
      %v1869 = vsel %vm846, %v423, %v1868
      %v1871 = vunpack.c.l.s4 1983009808
      %v1872 = vunpack.c.0.s8 %v1871
      %v1873 = vperm.slane %v1867, %v1872
      %v1875 = vunpack.c.l.s4 1983009808
      %v1876 = vunpack.c.0.s8 %v1875
      %v1877 = vperm.slane %v1869, %v1876
      %v1878 = vrot.slane %v468, 4
      %v1879 = vsel %vm846, %v1878, %v452
      %v1880 = vrot.slane %v452, 4
      %v1881 = vsel %vm846, %v468, %v1880
      %v1883 = vunpack.c.l.s4 1983009808
      %v1884 = vunpack.c.0.s8 %v1883
      %v1885 = vperm.slane %v1879, %v1884
      %v1887 = vunpack.c.l.s4 1983009808
      %v1888 = vunpack.c.0.s8 %v1887
      %v1889 = vperm.slane %v1881, %v1888
      %v1890 = vrot.slane %v476, 4
      %v1891 = vsel %vm846, %v1890, %v460
      %v1892 = vrot.slane %v460, 4
      %v1893 = vsel %vm846, %v476, %v1892
      %v1895 = vunpack.c.l.s4 1983009808
      %v1896 = vunpack.c.0.s8 %v1895
      %v1897 = vperm.slane %v1891, %v1896
      %v1899 = vunpack.c.l.s4 1983009808
      %v1900 = vunpack.c.0.s8 %v1899
      %v1901 = vperm.slane %v1893, %v1900
      %v1902 = vrot.slane %v1873, 4
      %v1903 = vsel %vm846, %v1902, %v1861
      %v1904 = vrot.slane %v1861, 4
      %v1905 = vsel %vm846, %v1873, %v1904
      %v1907 = vunpack.c.l.s4 1934713408
      %v1908 = vunpack.c.0.s8 %v1907
      %v1909 = vperm.slane %v1903, %v1908
      %v1911 = vunpack.c.l.s4 1934713408
      %v1912 = vunpack.c.0.s8 %v1911
      %v1913 = vperm.slane %v1905, %v1912
      %v1914 = vrot.slane %v1877, 4
      %v1915 = vsel %vm846, %v1914, %v1865
      %v1916 = vrot.slane %v1865, 4
      %v1917 = vsel %vm846, %v1877, %v1916
      %v1919 = vunpack.c.l.s4 1934713408
      %v1920 = vunpack.c.0.s8 %v1919
      %v1921 = vperm.slane %v1915, %v1920
      %v1923 = vunpack.c.l.s4 1934713408
      %v1924 = vunpack.c.0.s8 %v1923
      %v1925 = vperm.slane %v1917, %v1924
      %v1926 = vrot.slane %v1897, 4
      %v1927 = vsel %vm846, %v1926, %v1885
      %v1928 = vrot.slane %v1885, 4
      %v1929 = vsel %vm846, %v1897, %v1928
      %v1931 = vunpack.c.l.s4 1934713408
      %v1932 = vunpack.c.0.s8 %v1931
      %v1933 = vperm.slane %v1927, %v1932
      %v1935 = vunpack.c.l.s4 1934713408
      %v1936 = vunpack.c.0.s8 %v1935
      %v1937 = vperm.slane %v1929, %v1936
      %v1938 = vrot.slane %v1901, 4
      %v1939 = vsel %vm846, %v1938, %v1889
      %v1940 = vrot.slane %v1889, 4
      %v1941 = vsel %vm846, %v1901, %v1940
      %v1943 = vunpack.c.l.s4 1934713408
      %v1944 = vunpack.c.0.s8 %v1943
      %v1945 = vperm.slane %v1939, %v1944
      %v1947 = vunpack.c.l.s4 1934713408
      %v1948 = vunpack.c.0.s8 %v1947
      %v1949 = vperm.slane %v1941, %v1948
      %v1950 = vrot.slane %v1933, 4
      %v1951 = vsel %vm846, %v1950, %v1909
      %v1952 = vrot.slane %v1909, 4
      %v1953 = vsel %vm846, %v1933, %v1952
      %v1954 = vrot.slane %v1937, 4
      %v1955 = vsel %vm846, %v1954, %v1913
      %v1956 = vrot.slane %v1913, 4
      %v1957 = vsel %vm846, %v1937, %v1956
      %v1958 = vrot.slane %v1945, 4
      %v1959 = vsel %vm846, %v1958, %v1921
      %v1960 = vrot.slane %v1921, 4
      %v1961 = vsel %vm846, %v1945, %v1960
      %v1962 = vrot.slane %v1949, 4
      %v1963 = vsel %vm846, %v1962, %v1925
      %v1964 = vrot.slane %v1925, 4
      %v1965 = vsel %vm846, %v1949, %v1964
      %v1966 = vrot.slane %v516, 4
      %v1967 = vsel %vm846, %v1966, %v500
      %v1968 = vrot.slane %v500, 4
      %v1969 = vsel %vm846, %v516, %v1968
      %v1971 = vunpack.c.l.s4 1983009808
      %v1972 = vunpack.c.0.s8 %v1971
      %v1973 = vperm.slane %v1967, %v1972
      %v1975 = vunpack.c.l.s4 1983009808
      %v1976 = vunpack.c.0.s8 %v1975
      %v1977 = vperm.slane %v1969, %v1976
      %v1978 = vrot.slane %v524, 4
      %v1979 = vsel %vm846, %v1978, %v508
      %v1980 = vrot.slane %v508, 4
      %v1981 = vsel %vm846, %v524, %v1980
      %v1983 = vunpack.c.l.s4 1983009808
      %v1984 = vunpack.c.0.s8 %v1983
      %v1985 = vperm.slane %v1979, %v1984
      %v1987 = vunpack.c.l.s4 1983009808
      %v1988 = vunpack.c.0.s8 %v1987
      %v1989 = vperm.slane %v1981, %v1988
      %v1990 = vrot.slane %v572, 4
      %v1991 = vsel %vm846, %v1990, %v554
      %v1992 = vrot.slane %v554, 4
      %v1993 = vsel %vm846, %v572, %v1992
      %v1995 = vunpack.c.l.s4 1983009808
      %v1996 = vunpack.c.0.s8 %v1995
      %v1997 = vperm.slane %v1991, %v1996
      %v1999 = vunpack.c.l.s4 1983009808
      %v2000 = vunpack.c.0.s8 %v1999
      %v2001 = vperm.slane %v1993, %v2000
      %v2002 = vrot.slane %v581, 4
      %v2003 = vsel %vm846, %v2002, %v563
      %v2004 = vrot.slane %v563, 4
      %v2005 = vsel %vm846, %v581, %v2004
      %v2007 = vunpack.c.l.s4 1983009808
      %v2008 = vunpack.c.0.s8 %v2007
      %v2009 = vperm.slane %v2003, %v2008
      %v2011 = vunpack.c.l.s4 1983009808
      %v2012 = vunpack.c.0.s8 %v2011
      %v2013 = vperm.slane %v2005, %v2012
      %v2014 = vrot.slane %v1985, 4
      %v2015 = vsel %vm846, %v2014, %v1973
      %v2016 = vrot.slane %v1973, 4
      %v2017 = vsel %vm846, %v1985, %v2016
      %v2019 = vunpack.c.l.s4 1934713408
      %v2020 = vunpack.c.0.s8 %v2019
      %v2021 = vperm.slane %v2015, %v2020
      %v2023 = vunpack.c.l.s4 1934713408
      %v2024 = vunpack.c.0.s8 %v2023
      %v2025 = vperm.slane %v2017, %v2024
      %v2026 = vrot.slane %v1989, 4
      %v2027 = vsel %vm846, %v2026, %v1977
      %v2028 = vrot.slane %v1977, 4
      %v2029 = vsel %vm846, %v1989, %v2028
      %v2031 = vunpack.c.l.s4 1934713408
      %v2032 = vunpack.c.0.s8 %v2031
      %v2033 = vperm.slane %v2027, %v2032
      %v2035 = vunpack.c.l.s4 1934713408
      %v2036 = vunpack.c.0.s8 %v2035
      %v2037 = vperm.slane %v2029, %v2036
      %v2038 = vrot.slane %v2009, 4
      %v2039 = vsel %vm846, %v2038, %v1997
      %v2040 = vrot.slane %v1997, 4
      %v2041 = vsel %vm846, %v2009, %v2040
      %v2043 = vunpack.c.l.s4 1934713408
      %v2044 = vunpack.c.0.s8 %v2043
      %v2045 = vperm.slane %v2039, %v2044
      %v2047 = vunpack.c.l.s4 1934713408
      %v2048 = vunpack.c.0.s8 %v2047
      %v2049 = vperm.slane %v2041, %v2048
      %v2050 = vrot.slane %v2013, 4
      %v2051 = vsel %vm846, %v2050, %v2001
      %v2052 = vrot.slane %v2001, 4
      %v2053 = vsel %vm846, %v2013, %v2052
      %v2055 = vunpack.c.l.s4 1934713408
      %v2056 = vunpack.c.0.s8 %v2055
      %v2057 = vperm.slane %v2051, %v2056
      %v2059 = vunpack.c.l.s4 1934713408
      %v2060 = vunpack.c.0.s8 %v2059
      %v2061 = vperm.slane %v2053, %v2060
      %v2062 = vrot.slane %v2045, 4
      %v2063 = vsel %vm846, %v2062, %v2021
      %v2064 = vrot.slane %v2021, 4
      %v2065 = vsel %vm846, %v2045, %v2064
      %v2066 = vrot.slane %v2049, 4
      %v2067 = vsel %vm846, %v2066, %v2025
      %v2068 = vrot.slane %v2025, 4
      %v2069 = vsel %vm846, %v2049, %v2068
      %v2070 = vrot.slane %v2057, 4
      %v2071 = vsel %vm846, %v2070, %v2033
      %v2072 = vrot.slane %v2033, 4
      %v2073 = vsel %vm846, %v2057, %v2072
      %v2074 = vrot.slane %v2061, 4
      %v2075 = vsel %vm846, %v2074, %v2037
      %v2076 = vrot.slane %v2037, 4
      %v2077 = vsel %vm846, %v2061, %v2076
      %v2078 = vrot.slane %v621, 4
      %v2079 = vsel %vm846, %v2078, %v605
      %v2080 = vrot.slane %v605, 4
      %v2081 = vsel %vm846, %v621, %v2080
      %v2083 = vunpack.c.l.s4 1983009808
      %v2084 = vunpack.c.0.s8 %v2083
      %v2085 = vperm.slane %v2079, %v2084
      %v2087 = vunpack.c.l.s4 1983009808
      %v2088 = vunpack.c.0.s8 %v2087
      %v2089 = vperm.slane %v2081, %v2088
      %v2090 = vrot.slane %v629, 4
      %v2091 = vsel %vm846, %v2090, %v613
      %v2092 = vrot.slane %v613, 4
      %v2093 = vsel %vm846, %v629, %v2092
      %v2095 = vunpack.c.l.s4 1983009808
      %v2096 = vunpack.c.0.s8 %v2095
      %v2097 = vperm.slane %v2091, %v2096
      %v2099 = vunpack.c.l.s4 1983009808
      %v2100 = vunpack.c.0.s8 %v2099
      %v2101 = vperm.slane %v2093, %v2100
      %v2102 = vrot.slane %v669, 4
      %v2103 = vsel %vm846, %v2102, %v653
      %v2104 = vrot.slane %v653, 4
      %v2105 = vsel %vm846, %v669, %v2104
      %v2107 = vunpack.c.l.s4 1983009808
      %v2108 = vunpack.c.0.s8 %v2107
      %v2109 = vperm.slane %v2103, %v2108
      %v2111 = vunpack.c.l.s4 1983009808
      %v2112 = vunpack.c.0.s8 %v2111
      %v2113 = vperm.slane %v2105, %v2112
      %v2114 = vrot.slane %v677, 4
      %v2115 = vsel %vm846, %v2114, %v661
      %v2116 = vrot.slane %v661, 4
      %v2117 = vsel %vm846, %v677, %v2116
      %v2119 = vunpack.c.l.s4 1983009808
      %v2120 = vunpack.c.0.s8 %v2119
      %v2121 = vperm.slane %v2115, %v2120
      %v2123 = vunpack.c.l.s4 1983009808
      %v2124 = vunpack.c.0.s8 %v2123
      %v2125 = vperm.slane %v2117, %v2124
      %v2126 = vrot.slane %v2097, 4
      %v2127 = vsel %vm846, %v2126, %v2085
      %v2128 = vrot.slane %v2085, 4
      %v2129 = vsel %vm846, %v2097, %v2128
      %v2131 = vunpack.c.l.s4 1934713408
      %v2132 = vunpack.c.0.s8 %v2131
      %v2133 = vperm.slane %v2127, %v2132
      %v2135 = vunpack.c.l.s4 1934713408
      %v2136 = vunpack.c.0.s8 %v2135
      %v2137 = vperm.slane %v2129, %v2136
      %v2138 = vrot.slane %v2101, 4
      %v2139 = vsel %vm846, %v2138, %v2089
      %v2140 = vrot.slane %v2089, 4
      %v2141 = vsel %vm846, %v2101, %v2140
      %v2143 = vunpack.c.l.s4 1934713408
      %v2144 = vunpack.c.0.s8 %v2143
      %v2145 = vperm.slane %v2139, %v2144
      %v2147 = vunpack.c.l.s4 1934713408
      %v2148 = vunpack.c.0.s8 %v2147
      %v2149 = vperm.slane %v2141, %v2148
      %v2150 = vrot.slane %v2121, 4
      %v2151 = vsel %vm846, %v2150, %v2109
      %v2152 = vrot.slane %v2109, 4
      %v2153 = vsel %vm846, %v2121, %v2152
      %v2155 = vunpack.c.l.s4 1934713408
      %v2156 = vunpack.c.0.s8 %v2155
      %v2157 = vperm.slane %v2151, %v2156
      %v2159 = vunpack.c.l.s4 1934713408
      %v2160 = vunpack.c.0.s8 %v2159
      %v2161 = vperm.slane %v2153, %v2160
      %v2162 = vrot.slane %v2125, 4
      %v2163 = vsel %vm846, %v2162, %v2113
      %v2164 = vrot.slane %v2113, 4
      %v2165 = vsel %vm846, %v2125, %v2164
      %v2167 = vunpack.c.l.s4 1934713408
      %v2168 = vunpack.c.0.s8 %v2167
      %v2169 = vperm.slane %v2163, %v2168
      %v2171 = vunpack.c.l.s4 1934713408
      %v2172 = vunpack.c.0.s8 %v2171
      %v2173 = vperm.slane %v2165, %v2172
      %v2174 = vrot.slane %v2157, 4
      %v2175 = vsel %vm846, %v2174, %v2133
      %v2176 = vrot.slane %v2133, 4
      %v2177 = vsel %vm846, %v2157, %v2176
      %v2178 = vrot.slane %v2161, 4
      %v2179 = vsel %vm846, %v2178, %v2137
      %v2180 = vrot.slane %v2137, 4
      %v2181 = vsel %vm846, %v2161, %v2180
      %v2182 = vrot.slane %v2169, 4
      %v2183 = vsel %vm846, %v2182, %v2145
      %v2184 = vrot.slane %v2145, 4
      %v2185 = vsel %vm846, %v2169, %v2184
      %v2186 = vrot.slane %v2173, 4
      %v2187 = vsel %vm846, %v2186, %v2149
      %v2188 = vrot.slane %v2149, 4
      %v2189 = vsel %vm846, %v2173, %v2188
      %v2190 = vrot.slane %v721, 4
      %v2191 = vsel %vm846, %v2190, %v703
      %v2192 = vrot.slane %v703, 4
      %v2193 = vsel %vm846, %v721, %v2192
      %v2195 = vunpack.c.l.s4 1983009808
      %v2196 = vunpack.c.0.s8 %v2195
      %v2197 = vperm.slane %v2191, %v2196
      %v2199 = vunpack.c.l.s4 1983009808
      %v2200 = vunpack.c.0.s8 %v2199
      %v2201 = vperm.slane %v2193, %v2200
      %v2202 = vrot.slane %v730, 4
      %v2203 = vsel %vm846, %v2202, %v712
      %v2204 = vrot.slane %v712, 4
      %v2205 = vsel %vm846, %v730, %v2204
      %v2207 = vunpack.c.l.s4 1983009808
      %v2208 = vunpack.c.0.s8 %v2207
      %v2209 = vperm.slane %v2203, %v2208
      %v2211 = vunpack.c.l.s4 1983009808
      %v2212 = vunpack.c.0.s8 %v2211
      %v2213 = vperm.slane %v2205, %v2212
      %v2214 = vrot.slane %v770, 4
      %v2215 = vsel %vm846, %v2214, %v754
      %v2216 = vrot.slane %v754, 4
      %v2217 = vsel %vm846, %v770, %v2216
      %v2219 = vunpack.c.l.s4 1983009808
      %v2220 = vunpack.c.0.s8 %v2219
      %v2221 = vperm.slane %v2215, %v2220
      %v2223 = vunpack.c.l.s4 1983009808
      %v2224 = vunpack.c.0.s8 %v2223
      %v2225 = vperm.slane %v2217, %v2224
      %v2226 = vrot.slane %v778, 4
      %v2227 = vsel %vm846, %v2226, %v762
      %v2228 = vrot.slane %v762, 4
      %v2229 = vsel %vm846, %v778, %v2228
      %v2231 = vunpack.c.l.s4 1983009808
      %v2232 = vunpack.c.0.s8 %v2231
      %v2233 = vperm.slane %v2227, %v2232
      %v2235 = vunpack.c.l.s4 1983009808
      %v2236 = vunpack.c.0.s8 %v2235
      %v2237 = vperm.slane %v2229, %v2236
      %v2238 = vrot.slane %v2209, 4
      %v2239 = vsel %vm846, %v2238, %v2197
      %v2240 = vrot.slane %v2197, 4
      %v2241 = vsel %vm846, %v2209, %v2240
      %v2243 = vunpack.c.l.s4 1934713408
      %v2244 = vunpack.c.0.s8 %v2243
      %v2245 = vperm.slane %v2239, %v2244
      %v2247 = vunpack.c.l.s4 1934713408
      %v2248 = vunpack.c.0.s8 %v2247
      %v2249 = vperm.slane %v2241, %v2248
      %v2250 = vrot.slane %v2213, 4
      %v2251 = vsel %vm846, %v2250, %v2201
      %v2252 = vrot.slane %v2201, 4
      %v2253 = vsel %vm846, %v2213, %v2252
      %v2255 = vunpack.c.l.s4 1934713408
      %v2256 = vunpack.c.0.s8 %v2255
      %v2257 = vperm.slane %v2251, %v2256
      %v2259 = vunpack.c.l.s4 1934713408
      %v2260 = vunpack.c.0.s8 %v2259
      %v2261 = vperm.slane %v2253, %v2260
      %v2262 = vrot.slane %v2233, 4
      %v2263 = vsel %vm846, %v2262, %v2221
      %v2264 = vrot.slane %v2221, 4
      %v2265 = vsel %vm846, %v2233, %v2264
      %v2267 = vunpack.c.l.s4 1934713408
      %v2268 = vunpack.c.0.s8 %v2267
      %v2269 = vperm.slane %v2263, %v2268
      %v2271 = vunpack.c.l.s4 1934713408
      %v2272 = vunpack.c.0.s8 %v2271
      %v2273 = vperm.slane %v2265, %v2272
      %v2274 = vrot.slane %v2237, 4
      %v2275 = vsel %vm846, %v2274, %v2225
      %v2276 = vrot.slane %v2225, 4
      %v2277 = vsel %vm846, %v2237, %v2276
      %v2279 = vunpack.c.l.s4 1934713408
      %v2280 = vunpack.c.0.s8 %v2279
      %v2281 = vperm.slane %v2275, %v2280
      %v2283 = vunpack.c.l.s4 1934713408
      %v2284 = vunpack.c.0.s8 %v2283
      %v2285 = vperm.slane %v2277, %v2284
      %v2286 = vrot.slane %v2269, 4
      %v2287 = vsel %vm846, %v2286, %v2245
      %v2288 = vrot.slane %v2245, 4
      %v2289 = vsel %vm846, %v2269, %v2288
      %v2290 = vrot.slane %v2273, 4
      %v2291 = vsel %vm846, %v2290, %v2249
      %v2292 = vrot.slane %v2249, 4
      %v2293 = vsel %vm846, %v2273, %v2292
      %v2294 = vrot.slane %v2281, 4
      %v2295 = vsel %vm846, %v2294, %v2257
      %v2296 = vrot.slane %v2257, 4
      %v2297 = vsel %vm846, %v2281, %v2296
      %v2298 = vrot.slane %v2285, 4
      %v2299 = vsel %vm846, %v2298, %v2261
      %v2300 = vrot.slane %v2261, 4
      %v2301 = vsel %vm846, %v2285, %v2300
      %v2302 = vrot.slane %v818, 4
      %v2303 = vsel %vm846, %v2302, %v802
      %v2304 = vrot.slane %v802, 4
      %v2305 = vsel %vm846, %v818, %v2304
      %v2307 = vunpack.c.l.s4 1983009808
      %v2308 = vunpack.c.0.s8 %v2307
      %v2309 = vperm.slane %v2303, %v2308
      %v2311 = vunpack.c.l.s4 1983009808
      %v2312 = vunpack.c.0.s8 %v2311
      %v2313 = vperm.slane %v2305, %v2312
      %v2314 = vrot.slane %v826, 4
      %v2315 = vsel %vm846, %v2314, %v810
      %v2316 = vrot.slane %v810, 4
      %v2317 = vsel %vm846, %v826, %v2316
      %v2319 = vunpack.c.l.s4 1983009808
      %v2320 = vunpack.c.0.s8 %v2319
      %v2321 = vperm.slane %v2315, %v2320
      %v2323 = vunpack.c.l.s4 1983009808
      %v2324 = vunpack.c.0.s8 %v2323
      %v2325 = vperm.slane %v2317, %v2324
      %v2326 = vrot.slane %v2321, 4
      %v2327 = vsel %vm846, %v2326, %v2309
      %v2328 = vrot.slane %v2309, 4
      %v2329 = vsel %vm846, %v2321, %v2328
      %v2331 = vunpack.c.l.s4 1934713408
      %v2332 = vunpack.c.0.s8 %v2331
      %v2333 = vperm.slane %v2327, %v2332
      %v2335 = vunpack.c.l.s4 1934713408
      %v2336 = vunpack.c.0.s8 %v2335
      %v2337 = vperm.slane %v2329, %v2336
      %v2338 = vrot.slane %v2325, 4
      %v2339 = vsel %vm846, %v2338, %v2313
      %v2340 = vrot.slane %v2313, 4
      %v2341 = vsel %vm846, %v2325, %v2340
      %v2343 = vunpack.c.l.s4 1934713408
      %v2344 = vunpack.c.0.s8 %v2343
      %v2345 = vperm.slane %v2339, %v2344
      %v2347 = vunpack.c.l.s4 1934713408
      %v2348 = vunpack.c.0.s8 %v2347
      %v2349 = vperm.slane %v2341, %v2348
      %v2350 = vrot.slane %v2333, 4
      %v2351 = vsel %vm846, 0.0, %v2350
      %v2352 = vrot.slane %v2337, 4
      %v2353 = vsel %vm846, 0.0, %v2352
      %v2354 = vrot.slane %v2345, 4
      %v2355 = vsel %vm846, 0.0, %v2354
      %v2356 = vrot.slane %v2349, 4
      %v2357 = vsel %vm846, 0.0, %v2356
      %v2358 = vrot.slane %v394, 4
      %v2359 = vsel %vm846, %v2358, %v330
      %v2360 = vrot.slane %v330, 4
      %v2361 = vsel %vm846, %v394, %v2360
      %v2363 = vunpack.c.l.s4 1983009808
      %v2364 = vunpack.c.0.s8 %v2363
      %v2365 = vperm.slane %v2359, %v2364
      %v2367 = vunpack.c.l.s4 1983009808
      %v2368 = vunpack.c.0.s8 %v2367
      %v2369 = vperm.slane %v2361, %v2368
      %v2370 = vrot.slane %v426, 4
      %v2371 = vsel %vm846, %v2370, %v362
      %v2372 = vrot.slane %v362, 4
      %v2373 = vsel %vm846, %v426, %v2372
      %v2375 = vunpack.c.l.s4 1983009808
      %v2376 = vunpack.c.0.s8 %v2375
      %v2377 = vperm.slane %v2371, %v2376
      %v2379 = vunpack.c.l.s4 1983009808
      %v2380 = vunpack.c.0.s8 %v2379
      %v2381 = vperm.slane %v2373, %v2380
      %v2382 = vrot.slane %v470, 4
      %v2383 = vsel %vm846, %v2382, %v454
      %v2384 = vrot.slane %v454, 4
      %v2385 = vsel %vm846, %v470, %v2384
      %v2387 = vunpack.c.l.s4 1983009808
      %v2388 = vunpack.c.0.s8 %v2387
      %v2389 = vperm.slane %v2383, %v2388
      %v2391 = vunpack.c.l.s4 1983009808
      %v2392 = vunpack.c.0.s8 %v2391
      %v2393 = vperm.slane %v2385, %v2392
      %v2394 = vrot.slane %v478, 4
      %v2395 = vsel %vm846, %v2394, %v462
      %v2396 = vrot.slane %v462, 4
      %v2397 = vsel %vm846, %v478, %v2396
      %v2399 = vunpack.c.l.s4 1983009808
      %v2400 = vunpack.c.0.s8 %v2399
      %v2401 = vperm.slane %v2395, %v2400
      %v2403 = vunpack.c.l.s4 1983009808
      %v2404 = vunpack.c.0.s8 %v2403
      %v2405 = vperm.slane %v2397, %v2404
      %v2406 = vrot.slane %v2377, 4
      %v2407 = vsel %vm846, %v2406, %v2365
      %v2408 = vrot.slane %v2365, 4
      %v2409 = vsel %vm846, %v2377, %v2408
      %v2411 = vunpack.c.l.s4 1934713408
      %v2412 = vunpack.c.0.s8 %v2411
      %v2413 = vperm.slane %v2407, %v2412
      %v2415 = vunpack.c.l.s4 1934713408
      %v2416 = vunpack.c.0.s8 %v2415
      %v2417 = vperm.slane %v2409, %v2416
      %v2418 = vrot.slane %v2381, 4
      %v2419 = vsel %vm846, %v2418, %v2369
      %v2420 = vrot.slane %v2369, 4
      %v2421 = vsel %vm846, %v2381, %v2420
      %v2423 = vunpack.c.l.s4 1934713408
      %v2424 = vunpack.c.0.s8 %v2423
      %v2425 = vperm.slane %v2419, %v2424
      %v2427 = vunpack.c.l.s4 1934713408
      %v2428 = vunpack.c.0.s8 %v2427
      %v2429 = vperm.slane %v2421, %v2428
      %v2430 = vrot.slane %v2401, 4
      %v2431 = vsel %vm846, %v2430, %v2389
      %v2432 = vrot.slane %v2389, 4
      %v2433 = vsel %vm846, %v2401, %v2432
      %v2435 = vunpack.c.l.s4 1934713408
      %v2436 = vunpack.c.0.s8 %v2435
      %v2437 = vperm.slane %v2431, %v2436
      %v2439 = vunpack.c.l.s4 1934713408
      %v2440 = vunpack.c.0.s8 %v2439
      %v2441 = vperm.slane %v2433, %v2440
      %v2442 = vrot.slane %v2405, 4
      %v2443 = vsel %vm846, %v2442, %v2393
      %v2444 = vrot.slane %v2393, 4
      %v2445 = vsel %vm846, %v2405, %v2444
      %v2447 = vunpack.c.l.s4 1934713408
      %v2448 = vunpack.c.0.s8 %v2447
      %v2449 = vperm.slane %v2443, %v2448
      %v2451 = vunpack.c.l.s4 1934713408
      %v2452 = vunpack.c.0.s8 %v2451
      %v2453 = vperm.slane %v2445, %v2452
      %v2454 = vrot.slane %v2437, 4
      %v2455 = vsel %vm846, %v2454, %v2413
      %v2456 = vrot.slane %v2413, 4
      %v2457 = vsel %vm846, %v2437, %v2456
      %v2458 = vrot.slane %v2441, 4
      %v2459 = vsel %vm846, %v2458, %v2417
      %v2460 = vrot.slane %v2417, 4
      %v2461 = vsel %vm846, %v2441, %v2460
      %v2462 = vrot.slane %v2449, 4
      %v2463 = vsel %vm846, %v2462, %v2425
      %v2464 = vrot.slane %v2425, 4
      %v2465 = vsel %vm846, %v2449, %v2464
      %v2466 = vrot.slane %v2453, 4
      %v2467 = vsel %vm846, %v2466, %v2429
      %v2468 = vrot.slane %v2429, 4
      %v2469 = vsel %vm846, %v2453, %v2468
      %v2470 = vrot.slane %v518, 4
      %v2471 = vsel %vm846, %v2470, %v502
      %v2472 = vrot.slane %v502, 4
      %v2473 = vsel %vm846, %v518, %v2472
      %v2475 = vunpack.c.l.s4 1983009808
      %v2476 = vunpack.c.0.s8 %v2475
      %v2477 = vperm.slane %v2471, %v2476
      %v2479 = vunpack.c.l.s4 1983009808
      %v2480 = vunpack.c.0.s8 %v2479
      %v2481 = vperm.slane %v2473, %v2480
      %v2482 = vrot.slane %v526, 4
      %v2483 = vsel %vm846, %v2482, %v510
      %v2484 = vrot.slane %v510, 4
      %v2485 = vsel %vm846, %v526, %v2484
      %v2487 = vunpack.c.l.s4 1983009808
      %v2488 = vunpack.c.0.s8 %v2487
      %v2489 = vperm.slane %v2483, %v2488
      %v2491 = vunpack.c.l.s4 1983009808
      %v2492 = vunpack.c.0.s8 %v2491
      %v2493 = vperm.slane %v2485, %v2492
      %v2494 = vrot.slane %v574, 4
      %v2495 = vsel %vm846, %v2494, %v556
      %v2496 = vrot.slane %v556, 4
      %v2497 = vsel %vm846, %v574, %v2496
      %v2499 = vunpack.c.l.s4 1983009808
      %v2500 = vunpack.c.0.s8 %v2499
      %v2501 = vperm.slane %v2495, %v2500
      %v2503 = vunpack.c.l.s4 1983009808
      %v2504 = vunpack.c.0.s8 %v2503
      %v2505 = vperm.slane %v2497, %v2504
      %v2506 = vrot.slane %v583, 4
      %v2507 = vsel %vm846, %v2506, %v565
      %v2508 = vrot.slane %v565, 4
      %v2509 = vsel %vm846, %v583, %v2508
      %v2511 = vunpack.c.l.s4 1983009808
      %v2512 = vunpack.c.0.s8 %v2511
      %v2513 = vperm.slane %v2507, %v2512
      %v2515 = vunpack.c.l.s4 1983009808
      %v2516 = vunpack.c.0.s8 %v2515
      %v2517 = vperm.slane %v2509, %v2516
      %v2518 = vrot.slane %v2489, 4
      %v2519 = vsel %vm846, %v2518, %v2477
      %v2520 = vrot.slane %v2477, 4
      %v2521 = vsel %vm846, %v2489, %v2520
      %v2523 = vunpack.c.l.s4 1934713408
      %v2524 = vunpack.c.0.s8 %v2523
      %v2525 = vperm.slane %v2519, %v2524
      %v2527 = vunpack.c.l.s4 1934713408
      %v2528 = vunpack.c.0.s8 %v2527
      %v2529 = vperm.slane %v2521, %v2528
      %v2530 = vrot.slane %v2493, 4
      %v2531 = vsel %vm846, %v2530, %v2481
      %v2532 = vrot.slane %v2481, 4
      %v2533 = vsel %vm846, %v2493, %v2532
      %v2535 = vunpack.c.l.s4 1934713408
      %v2536 = vunpack.c.0.s8 %v2535
      %v2537 = vperm.slane %v2531, %v2536
      %v2539 = vunpack.c.l.s4 1934713408
      %v2540 = vunpack.c.0.s8 %v2539
      %v2541 = vperm.slane %v2533, %v2540
      %v2542 = vrot.slane %v2513, 4
      %v2543 = vsel %vm846, %v2542, %v2501
      %v2544 = vrot.slane %v2501, 4
      %v2545 = vsel %vm846, %v2513, %v2544
      %v2547 = vunpack.c.l.s4 1934713408
      %v2548 = vunpack.c.0.s8 %v2547
      %v2549 = vperm.slane %v2543, %v2548
      %v2551 = vunpack.c.l.s4 1934713408
      %v2552 = vunpack.c.0.s8 %v2551
      %v2553 = vperm.slane %v2545, %v2552
      %v2554 = vrot.slane %v2517, 4
      %v2555 = vsel %vm846, %v2554, %v2505
      %v2556 = vrot.slane %v2505, 4
      %v2557 = vsel %vm846, %v2517, %v2556
      %v2559 = vunpack.c.l.s4 1934713408
      %v2560 = vunpack.c.0.s8 %v2559
      %v2561 = vperm.slane %v2555, %v2560
      %v2563 = vunpack.c.l.s4 1934713408
      %v2564 = vunpack.c.0.s8 %v2563
      %v2565 = vperm.slane %v2557, %v2564
      %v2566 = vrot.slane %v2549, 4
      %v2567 = vsel %vm846, %v2566, %v2525
      %v2568 = vrot.slane %v2525, 4
      %v2569 = vsel %vm846, %v2549, %v2568
      %v2570 = vrot.slane %v2553, 4
      %v2571 = vsel %vm846, %v2570, %v2529
      %v2572 = vrot.slane %v2529, 4
      %v2573 = vsel %vm846, %v2553, %v2572
      %v2574 = vrot.slane %v2561, 4
      %v2575 = vsel %vm846, %v2574, %v2537
      %v2576 = vrot.slane %v2537, 4
      %v2577 = vsel %vm846, %v2561, %v2576
      %v2578 = vrot.slane %v2565, 4
      %v2579 = vsel %vm846, %v2578, %v2541
      %v2580 = vrot.slane %v2541, 4
      %v2581 = vsel %vm846, %v2565, %v2580
      %v2582 = vrot.slane %v623, 4
      %v2583 = vsel %vm846, %v2582, %v607
      %v2584 = vrot.slane %v607, 4
      %v2585 = vsel %vm846, %v623, %v2584
      %v2587 = vunpack.c.l.s4 1983009808
      %v2588 = vunpack.c.0.s8 %v2587
      %v2589 = vperm.slane %v2583, %v2588
      %v2591 = vunpack.c.l.s4 1983009808
      %v2592 = vunpack.c.0.s8 %v2591
      %v2593 = vperm.slane %v2585, %v2592
      %v2594 = vrot.slane %v631, 4
      %v2595 = vsel %vm846, %v2594, %v615
      %v2596 = vrot.slane %v615, 4
      %v2597 = vsel %vm846, %v631, %v2596
      %v2599 = vunpack.c.l.s4 1983009808
      %v2600 = vunpack.c.0.s8 %v2599
      %v2601 = vperm.slane %v2595, %v2600
      %v2603 = vunpack.c.l.s4 1983009808
      %v2604 = vunpack.c.0.s8 %v2603
      %v2605 = vperm.slane %v2597, %v2604
      %v2606 = vrot.slane %v671, 4
      %v2607 = vsel %vm846, %v2606, %v655
      %v2608 = vrot.slane %v655, 4
      %v2609 = vsel %vm846, %v671, %v2608
      %v2611 = vunpack.c.l.s4 1983009808
      %v2612 = vunpack.c.0.s8 %v2611
      %v2613 = vperm.slane %v2607, %v2612
      %v2615 = vunpack.c.l.s4 1983009808
      %v2616 = vunpack.c.0.s8 %v2615
      %v2617 = vperm.slane %v2609, %v2616
      %v2618 = vrot.slane %v679, 4
      %v2619 = vsel %vm846, %v2618, %v663
      %v2620 = vrot.slane %v663, 4
      %v2621 = vsel %vm846, %v679, %v2620
      %v2623 = vunpack.c.l.s4 1983009808
      %v2624 = vunpack.c.0.s8 %v2623
      %v2625 = vperm.slane %v2619, %v2624
      %v2627 = vunpack.c.l.s4 1983009808
      %v2628 = vunpack.c.0.s8 %v2627
      %v2629 = vperm.slane %v2621, %v2628
      %v2630 = vrot.slane %v2601, 4
      %v2631 = vsel %vm846, %v2630, %v2589
      %v2632 = vrot.slane %v2589, 4
      %v2633 = vsel %vm846, %v2601, %v2632
      %v2635 = vunpack.c.l.s4 1934713408
      %v2636 = vunpack.c.0.s8 %v2635
      %v2637 = vperm.slane %v2631, %v2636
      %v2639 = vunpack.c.l.s4 1934713408
      %v2640 = vunpack.c.0.s8 %v2639
      %v2641 = vperm.slane %v2633, %v2640
      %v2642 = vrot.slane %v2605, 4
      %v2643 = vsel %vm846, %v2642, %v2593
      %v2644 = vrot.slane %v2593, 4
      %v2645 = vsel %vm846, %v2605, %v2644
      %v2647 = vunpack.c.l.s4 1934713408
      %v2648 = vunpack.c.0.s8 %v2647
      %v2649 = vperm.slane %v2643, %v2648
      %v2651 = vunpack.c.l.s4 1934713408
      %v2652 = vunpack.c.0.s8 %v2651
      %v2653 = vperm.slane %v2645, %v2652
      %v2654 = vrot.slane %v2625, 4
      %v2655 = vsel %vm846, %v2654, %v2613
      %v2656 = vrot.slane %v2613, 4
      %v2657 = vsel %vm846, %v2625, %v2656
      %v2659 = vunpack.c.l.s4 1934713408
      %v2660 = vunpack.c.0.s8 %v2659
      %v2661 = vperm.slane %v2655, %v2660
      %v2663 = vunpack.c.l.s4 1934713408
      %v2664 = vunpack.c.0.s8 %v2663
      %v2665 = vperm.slane %v2657, %v2664
      %v2666 = vrot.slane %v2629, 4
      %v2667 = vsel %vm846, %v2666, %v2617
      %v2668 = vrot.slane %v2617, 4
      %v2669 = vsel %vm846, %v2629, %v2668
      %v2671 = vunpack.c.l.s4 1934713408
      %v2672 = vunpack.c.0.s8 %v2671
      %v2673 = vperm.slane %v2667, %v2672
      %v2675 = vunpack.c.l.s4 1934713408
      %v2676 = vunpack.c.0.s8 %v2675
      %v2677 = vperm.slane %v2669, %v2676
      %v2678 = vrot.slane %v2661, 4
      %v2679 = vsel %vm846, %v2678, %v2637
      %v2680 = vrot.slane %v2637, 4
      %v2681 = vsel %vm846, %v2661, %v2680
      %v2682 = vrot.slane %v2665, 4
      %v2683 = vsel %vm846, %v2682, %v2641
      %v2684 = vrot.slane %v2641, 4
      %v2685 = vsel %vm846, %v2665, %v2684
      %v2686 = vrot.slane %v2673, 4
      %v2687 = vsel %vm846, %v2686, %v2649
      %v2688 = vrot.slane %v2649, 4
      %v2689 = vsel %vm846, %v2673, %v2688
      %v2690 = vrot.slane %v2677, 4
      %v2691 = vsel %vm846, %v2690, %v2653
      %v2692 = vrot.slane %v2653, 4
      %v2693 = vsel %vm846, %v2677, %v2692
      %v2694 = vrot.slane %v723, 4
      %v2695 = vsel %vm846, %v2694, %v705
      %v2696 = vrot.slane %v705, 4
      %v2697 = vsel %vm846, %v723, %v2696
      %v2699 = vunpack.c.l.s4 1983009808
      %v2700 = vunpack.c.0.s8 %v2699
      %v2701 = vperm.slane %v2695, %v2700
      %v2703 = vunpack.c.l.s4 1983009808
      %v2704 = vunpack.c.0.s8 %v2703
      %v2705 = vperm.slane %v2697, %v2704
      %v2706 = vrot.slane %v732, 4
      %v2707 = vsel %vm846, %v2706, %v714
      %v2708 = vrot.slane %v714, 4
      %v2709 = vsel %vm846, %v732, %v2708
      %v2711 = vunpack.c.l.s4 1983009808
      %v2712 = vunpack.c.0.s8 %v2711
      %v2713 = vperm.slane %v2707, %v2712
      %v2715 = vunpack.c.l.s4 1983009808
      %v2716 = vunpack.c.0.s8 %v2715
      %v2717 = vperm.slane %v2709, %v2716
      %v2718 = vrot.slane %v772, 4
      %v2719 = vsel %vm846, %v2718, %v756
      %v2720 = vrot.slane %v756, 4
      %v2721 = vsel %vm846, %v772, %v2720
      %v2723 = vunpack.c.l.s4 1983009808
      %v2724 = vunpack.c.0.s8 %v2723
      %v2725 = vperm.slane %v2719, %v2724
      %v2727 = vunpack.c.l.s4 1983009808
      %v2728 = vunpack.c.0.s8 %v2727
      %v2729 = vperm.slane %v2721, %v2728
      %v2730 = vrot.slane %v780, 4
      %v2731 = vsel %vm846, %v2730, %v764
      %v2732 = vrot.slane %v764, 4
      %v2733 = vsel %vm846, %v780, %v2732
      %v2735 = vunpack.c.l.s4 1983009808
      %v2736 = vunpack.c.0.s8 %v2735
      %v2737 = vperm.slane %v2731, %v2736
      %v2739 = vunpack.c.l.s4 1983009808
      %v2740 = vunpack.c.0.s8 %v2739
      %v2741 = vperm.slane %v2733, %v2740
      %v2742 = vrot.slane %v2713, 4
      %v2743 = vsel %vm846, %v2742, %v2701
      %v2744 = vrot.slane %v2701, 4
      %v2745 = vsel %vm846, %v2713, %v2744
      %v2747 = vunpack.c.l.s4 1934713408
      %v2748 = vunpack.c.0.s8 %v2747
      %v2749 = vperm.slane %v2743, %v2748
      %v2751 = vunpack.c.l.s4 1934713408
      %v2752 = vunpack.c.0.s8 %v2751
      %v2753 = vperm.slane %v2745, %v2752
      %v2754 = vrot.slane %v2717, 4
      %v2755 = vsel %vm846, %v2754, %v2705
      %v2756 = vrot.slane %v2705, 4
      %v2757 = vsel %vm846, %v2717, %v2756
      %v2759 = vunpack.c.l.s4 1934713408
      %v2760 = vunpack.c.0.s8 %v2759
      %v2761 = vperm.slane %v2755, %v2760
      %v2763 = vunpack.c.l.s4 1934713408
      %v2764 = vunpack.c.0.s8 %v2763
      %v2765 = vperm.slane %v2757, %v2764
      %v2766 = vrot.slane %v2737, 4
      %v2767 = vsel %vm846, %v2766, %v2725
      %v2768 = vrot.slane %v2725, 4
      %v2769 = vsel %vm846, %v2737, %v2768
      %v2771 = vunpack.c.l.s4 1934713408
      %v2772 = vunpack.c.0.s8 %v2771
      %v2773 = vperm.slane %v2767, %v2772
      %v2775 = vunpack.c.l.s4 1934713408
      %v2776 = vunpack.c.0.s8 %v2775
      %v2777 = vperm.slane %v2769, %v2776
      %v2778 = vrot.slane %v2741, 4
      %v2779 = vsel %vm846, %v2778, %v2729
      %v2780 = vrot.slane %v2729, 4
      %v2781 = vsel %vm846, %v2741, %v2780
      %v2783 = vunpack.c.l.s4 1934713408
      %v2784 = vunpack.c.0.s8 %v2783
      %v2785 = vperm.slane %v2779, %v2784
      %v2787 = vunpack.c.l.s4 1934713408
      %v2788 = vunpack.c.0.s8 %v2787
      %v2789 = vperm.slane %v2781, %v2788
      %v2790 = vrot.slane %v2773, 4
      %v2791 = vsel %vm846, %v2790, %v2749
      %v2792 = vrot.slane %v2749, 4
      %v2793 = vsel %vm846, %v2773, %v2792
      %v2794 = vrot.slane %v2777, 4
      %v2795 = vsel %vm846, %v2794, %v2753
      %v2796 = vrot.slane %v2753, 4
      %v2797 = vsel %vm846, %v2777, %v2796
      %v2798 = vrot.slane %v2785, 4
      %v2799 = vsel %vm846, %v2798, %v2761
      %v2800 = vrot.slane %v2761, 4
      %v2801 = vsel %vm846, %v2785, %v2800
      %v2802 = vrot.slane %v2789, 4
      %v2803 = vsel %vm846, %v2802, %v2765
      %v2804 = vrot.slane %v2765, 4
      %v2805 = vsel %vm846, %v2789, %v2804
      %v2806 = vrot.slane %v820, 4
      %v2807 = vsel %vm846, %v2806, %v804
      %v2808 = vrot.slane %v804, 4
      %v2809 = vsel %vm846, %v820, %v2808
      %v2811 = vunpack.c.l.s4 1983009808
      %v2812 = vunpack.c.0.s8 %v2811
      %v2813 = vperm.slane %v2807, %v2812
      %v2815 = vunpack.c.l.s4 1983009808
      %v2816 = vunpack.c.0.s8 %v2815
      %v2817 = vperm.slane %v2809, %v2816
      %v2818 = vrot.slane %v828, 4
      %v2819 = vsel %vm846, %v2818, %v812
      %v2820 = vrot.slane %v812, 4
      %v2821 = vsel %vm846, %v828, %v2820
      %v2823 = vunpack.c.l.s4 1983009808
      %v2824 = vunpack.c.0.s8 %v2823
      %v2825 = vperm.slane %v2819, %v2824
      %v2827 = vunpack.c.l.s4 1983009808
      %v2828 = vunpack.c.0.s8 %v2827
      %v2829 = vperm.slane %v2821, %v2828
      %v2830 = vrot.slane %v2825, 4
      %v2831 = vsel %vm846, %v2830, %v2813
      %v2832 = vrot.slane %v2813, 4
      %v2833 = vsel %vm846, %v2825, %v2832
      %v2835 = vunpack.c.l.s4 1934713408
      %v2836 = vunpack.c.0.s8 %v2835
      %v2837 = vperm.slane %v2831, %v2836
      %v2839 = vunpack.c.l.s4 1934713408
      %v2840 = vunpack.c.0.s8 %v2839
      %v2841 = vperm.slane %v2833, %v2840
      %v2842 = vrot.slane %v2829, 4
      %v2843 = vsel %vm846, %v2842, %v2817
      %v2844 = vrot.slane %v2817, 4
      %v2845 = vsel %vm846, %v2829, %v2844
      %v2847 = vunpack.c.l.s4 1934713408
      %v2848 = vunpack.c.0.s8 %v2847
      %v2849 = vperm.slane %v2843, %v2848
      %v2851 = vunpack.c.l.s4 1934713408
      %v2852 = vunpack.c.0.s8 %v2851
      %v2853 = vperm.slane %v2845, %v2852
      %v2854 = vrot.slane %v2837, 4
      %v2855 = vsel %vm846, 0.0, %v2854
      %v2856 = vrot.slane %v2841, 4
      %v2857 = vsel %vm846, 0.0, %v2856
      %v2858 = vrot.slane %v2849, 4
      %v2859 = vsel %vm846, 0.0, %v2858
      %v2860 = vrot.slane %v2853, 4
      %v2861 = vsel %vm846, 0.0, %v2860
      %2867 = vrot.lane.b32.xlu0 %v945, 32
      %v2868 = vpop.permute.xlu0 %2867
      %2869 = vrot.lane.b32.xlu0 %v1057, 32
      %v2870 = vpop.permute.xlu0 %2869
      %2871 = vrot.lane.b32.xlu0 %v1169, 32
      %v2872 = vpop.permute.xlu0 %2871
      %2873 = vrot.lane.b32.xlu0 %v1281, 32
      %v2874 = vpop.permute.xlu0 %2873
      %2875 = vrot.lane.b32.xlu0 %v1343, 32
      %v2876 = vpop.permute.xlu0 %2875
      %2887 = vrot.lane.b32.xlu0 %v947, 64
      %v2888 = vpop.permute.xlu0 %2887
      %2889 = vrot.lane.b32.xlu0 %v1059, 64
      %v2890 = vpop.permute.xlu0 %2889
      %2891 = vrot.lane.b32.xlu0 %v1171, 64
      %v2892 = vpop.permute.xlu0 %2891
      %2893 = vrot.lane.b32.xlu0 %v1283, 64
      %v2894 = vpop.permute.xlu0 %2893
      %2895 = vrot.lane.b32.xlu0 %v1329, 64
      %v2896 = vpop.permute.xlu0 %2895
      %2907 = vrot.lane.b32.xlu0 %v949, 96
      %v2908 = vpop.permute.xlu0 %2907
      %2909 = vrot.lane.b32.xlu0 %v1061, 96
      %v2910 = vpop.permute.xlu0 %2909
      %2911 = vrot.lane.b32.xlu0 %v1173, 96
      %v2912 = vpop.permute.xlu0 %2911
      %2913 = vrot.lane.b32.xlu0 %v1285, 96
      %v2914 = vpop.permute.xlu0 %2913
      %2915 = vrot.lane.b32.xlu0 %v1345, 96
      %v2916 = vpop.permute.xlu0 %2915
      %2927 = vrot.lane.b32.xlu0 %v953, 32
      %v2928 = vpop.permute.xlu0 %2927
      %2929 = vrot.lane.b32.xlu0 %v1065, 32
      %v2930 = vpop.permute.xlu0 %2929
      %2931 = vrot.lane.b32.xlu0 %v1177, 32
      %v2932 = vpop.permute.xlu0 %2931
      %2933 = vrot.lane.b32.xlu0 %v1289, 32
      %v2934 = vpop.permute.xlu0 %2933
      %2935 = vrot.lane.b32.xlu0 %v1347, 32
      %v2936 = vpop.permute.xlu0 %2935
      %2947 = vrot.lane.b32.xlu0 %v955, 64
      %v2948 = vpop.permute.xlu0 %2947
      %2949 = vrot.lane.b32.xlu0 %v1067, 64
      %v2950 = vpop.permute.xlu0 %2949
      %2951 = vrot.lane.b32.xlu0 %v1179, 64
      %v2952 = vpop.permute.xlu0 %2951
      %2953 = vrot.lane.b32.xlu0 %v1291, 64
      %v2954 = vpop.permute.xlu0 %2953
      %2955 = vrot.lane.b32.xlu0 %v1341, 64
      %v2956 = vpop.permute.xlu0 %2955
      %2967 = vrot.lane.b32.xlu0 %v957, 96
      %v2968 = vpop.permute.xlu0 %2967
      %2969 = vrot.lane.b32.xlu0 %v1069, 96
      %v2970 = vpop.permute.xlu0 %2969
      %2971 = vrot.lane.b32.xlu0 %v1181, 96
      %v2972 = vpop.permute.xlu0 %2971
      %2973 = vrot.lane.b32.xlu0 %v1293, 96
      %v2974 = vpop.permute.xlu0 %2973
      %2975 = vrot.lane.b32.xlu0 %v1349, 96
      %v2976 = vpop.permute.xlu0 %2975
      %2987 = vrot.lane.b32.xlu0 %v1449, 32
      %v2988 = vpop.permute.xlu0 %2987
      %2989 = vrot.lane.b32.xlu0 %v1561, 32
      %v2990 = vpop.permute.xlu0 %2989
      %2991 = vrot.lane.b32.xlu0 %v1673, 32
      %v2992 = vpop.permute.xlu0 %2991
      %2993 = vrot.lane.b32.xlu0 %v1785, 32
      %v2994 = vpop.permute.xlu0 %2993
      %2995 = vrot.lane.b32.xlu0 %v1847, 32
      %v2996 = vpop.permute.xlu0 %2995
      %3007 = vrot.lane.b32.xlu0 %v1451, 64
      %v3008 = vpop.permute.xlu0 %3007
      %3009 = vrot.lane.b32.xlu0 %v1563, 64
      %v3010 = vpop.permute.xlu0 %3009
      %3011 = vrot.lane.b32.xlu0 %v1675, 64
      %v3012 = vpop.permute.xlu0 %3011
      %3013 = vrot.lane.b32.xlu0 %v1787, 64
      %v3014 = vpop.permute.xlu0 %3013
      %3015 = vrot.lane.b32.xlu0 %v1833, 64
      %v3016 = vpop.permute.xlu0 %3015
      %3027 = vrot.lane.b32.xlu0 %v1453, 96
      %v3028 = vpop.permute.xlu0 %3027
      %3029 = vrot.lane.b32.xlu0 %v1565, 96
      %v3030 = vpop.permute.xlu0 %3029
      %3031 = vrot.lane.b32.xlu0 %v1677, 96
      %v3032 = vpop.permute.xlu0 %3031
      %3033 = vrot.lane.b32.xlu0 %v1789, 96
      %v3034 = vpop.permute.xlu0 %3033
      %3035 = vrot.lane.b32.xlu0 %v1849, 96
      %v3036 = vpop.permute.xlu0 %3035
      %3047 = vrot.lane.b32.xlu0 %v1457, 32
      %v3048 = vpop.permute.xlu0 %3047
      %3049 = vrot.lane.b32.xlu0 %v1569, 32
      %v3050 = vpop.permute.xlu0 %3049
      %3051 = vrot.lane.b32.xlu0 %v1681, 32
      %v3052 = vpop.permute.xlu0 %3051
      %3053 = vrot.lane.b32.xlu0 %v1793, 32
      %v3054 = vpop.permute.xlu0 %3053
      %3055 = vrot.lane.b32.xlu0 %v1851, 32
      %v3056 = vpop.permute.xlu0 %3055
      %3067 = vrot.lane.b32.xlu0 %v1459, 64
      %v3068 = vpop.permute.xlu0 %3067
      %3069 = vrot.lane.b32.xlu0 %v1571, 64
      %v3070 = vpop.permute.xlu0 %3069
      %3071 = vrot.lane.b32.xlu0 %v1683, 64
      %v3072 = vpop.permute.xlu0 %3071
      %3073 = vrot.lane.b32.xlu0 %v1795, 64
      %v3074 = vpop.permute.xlu0 %3073
      %3075 = vrot.lane.b32.xlu0 %v1845, 64
      %v3076 = vpop.permute.xlu0 %3075
      %3087 = vrot.lane.b32.xlu0 %v1461, 96
      %v3088 = vpop.permute.xlu0 %3087
      %3089 = vrot.lane.b32.xlu0 %v1573, 96
      %v3090 = vpop.permute.xlu0 %3089
      %3091 = vrot.lane.b32.xlu0 %v1685, 96
      %v3092 = vpop.permute.xlu0 %3091
      %3093 = vrot.lane.b32.xlu0 %v1797, 96
      %v3094 = vpop.permute.xlu0 %3093
      %3095 = vrot.lane.b32.xlu0 %v1853, 96
      %v3096 = vpop.permute.xlu0 %3095
      %3107 = vrot.lane.b32.xlu0 %v1953, 32
      %v3108 = vpop.permute.xlu0 %3107
      %3109 = vrot.lane.b32.xlu0 %v2065, 32
      %v3110 = vpop.permute.xlu0 %3109
      %3111 = vrot.lane.b32.xlu0 %v2177, 32
      %v3112 = vpop.permute.xlu0 %3111
      %3113 = vrot.lane.b32.xlu0 %v2289, 32
      %v3114 = vpop.permute.xlu0 %3113
      %3115 = vrot.lane.b32.xlu0 %v2351, 32
      %v3116 = vpop.permute.xlu0 %3115
      %3127 = vrot.lane.b32.xlu0 %v1955, 64
      %v3128 = vpop.permute.xlu0 %3127
      %3129 = vrot.lane.b32.xlu0 %v2067, 64
      %v3130 = vpop.permute.xlu0 %3129
      %3131 = vrot.lane.b32.xlu0 %v2179, 64
      %v3132 = vpop.permute.xlu0 %3131
      %3133 = vrot.lane.b32.xlu0 %v2291, 64
      %v3134 = vpop.permute.xlu0 %3133
      %3135 = vrot.lane.b32.xlu0 %v2337, 64
      %v3136 = vpop.permute.xlu0 %3135
      %3147 = vrot.lane.b32.xlu0 %v1957, 96
      %v3148 = vpop.permute.xlu0 %3147
      %3149 = vrot.lane.b32.xlu0 %v2069, 96
      %v3150 = vpop.permute.xlu0 %3149
      %3151 = vrot.lane.b32.xlu0 %v2181, 96
      %v3152 = vpop.permute.xlu0 %3151
      %3153 = vrot.lane.b32.xlu0 %v2293, 96
      %v3154 = vpop.permute.xlu0 %3153
      %3155 = vrot.lane.b32.xlu0 %v2353, 96
      %v3156 = vpop.permute.xlu0 %3155
      %3167 = vrot.lane.b32.xlu0 %v1961, 32
      %v3168 = vpop.permute.xlu0 %3167
      %3169 = vrot.lane.b32.xlu0 %v2073, 32
      %v3170 = vpop.permute.xlu0 %3169
      %3171 = vrot.lane.b32.xlu0 %v2185, 32
      %v3172 = vpop.permute.xlu0 %3171
      %3173 = vrot.lane.b32.xlu0 %v2297, 32
      %v3174 = vpop.permute.xlu0 %3173
      %3175 = vrot.lane.b32.xlu0 %v2355, 32
      %v3176 = vpop.permute.xlu0 %3175
      %3187 = vrot.lane.b32.xlu0 %v1963, 64
      %v3188 = vpop.permute.xlu0 %3187
      %3189 = vrot.lane.b32.xlu0 %v2075, 64
      %v3190 = vpop.permute.xlu0 %3189
      %3191 = vrot.lane.b32.xlu0 %v2187, 64
      %v3192 = vpop.permute.xlu0 %3191
      %3193 = vrot.lane.b32.xlu0 %v2299, 64
      %v3194 = vpop.permute.xlu0 %3193
      %3195 = vrot.lane.b32.xlu0 %v2349, 64
      %v3196 = vpop.permute.xlu0 %3195
      %3207 = vrot.lane.b32.xlu0 %v1965, 96
      %v3208 = vpop.permute.xlu0 %3207
      %3209 = vrot.lane.b32.xlu0 %v2077, 96
      %v3210 = vpop.permute.xlu0 %3209
      %3211 = vrot.lane.b32.xlu0 %v2189, 96
      %v3212 = vpop.permute.xlu0 %3211
      %3213 = vrot.lane.b32.xlu0 %v2301, 96
      %v3214 = vpop.permute.xlu0 %3213
      %3215 = vrot.lane.b32.xlu0 %v2357, 96
      %v3216 = vpop.permute.xlu0 %3215
      %3227 = vrot.lane.b32.xlu0 %v2457, 32
      %v3228 = vpop.permute.xlu0 %3227
      %3229 = vrot.lane.b32.xlu0 %v2569, 32
      %v3230 = vpop.permute.xlu0 %3229
      %3231 = vrot.lane.b32.xlu0 %v2681, 32
      %v3232 = vpop.permute.xlu0 %3231
      %3233 = vrot.lane.b32.xlu0 %v2793, 32
      %v3234 = vpop.permute.xlu0 %3233
      %3235 = vrot.lane.b32.xlu0 %v2855, 32
      %v3236 = vpop.permute.xlu0 %3235
      %3247 = vrot.lane.b32.xlu0 %v2459, 64
      %v3248 = vpop.permute.xlu0 %3247
      %3249 = vrot.lane.b32.xlu0 %v2571, 64
      %v3250 = vpop.permute.xlu0 %3249
      %3251 = vrot.lane.b32.xlu0 %v2683, 64
      %v3252 = vpop.permute.xlu0 %3251
      %3253 = vrot.lane.b32.xlu0 %v2795, 64
      %v3254 = vpop.permute.xlu0 %3253
      %3255 = vrot.lane.b32.xlu0 %v2841, 64
      %v3256 = vpop.permute.xlu0 %3255
      %3267 = vrot.lane.b32.xlu0 %v2461, 96
      %v3268 = vpop.permute.xlu0 %3267
      %3269 = vrot.lane.b32.xlu0 %v2573, 96
      %v3270 = vpop.permute.xlu0 %3269
      %3271 = vrot.lane.b32.xlu0 %v2685, 96
      %v3272 = vpop.permute.xlu0 %3271
      %3273 = vrot.lane.b32.xlu0 %v2797, 96
      %v3274 = vpop.permute.xlu0 %3273
      %3275 = vrot.lane.b32.xlu0 %v2857, 96
      %v3276 = vpop.permute.xlu0 %3275
      %3287 = vrot.lane.b32.xlu0 %v2465, 32
      %v3288 = vpop.permute.xlu0 %3287
      %3289 = vrot.lane.b32.xlu0 %v2577, 32
      %v3290 = vpop.permute.xlu0 %3289
      %3291 = vrot.lane.b32.xlu0 %v2689, 32
      %v3292 = vpop.permute.xlu0 %3291
      %3293 = vrot.lane.b32.xlu0 %v2801, 32
      %v3294 = vpop.permute.xlu0 %3293
      %3295 = vrot.lane.b32.xlu0 %v2859, 32
      %v3296 = vpop.permute.xlu0 %3295
      %3307 = vrot.lane.b32.xlu0 %v2467, 64
      %v3308 = vpop.permute.xlu0 %3307
      %3309 = vrot.lane.b32.xlu0 %v2579, 64
      %v3310 = vpop.permute.xlu0 %3309
      %3311 = vrot.lane.b32.xlu0 %v2691, 64
      %v3312 = vpop.permute.xlu0 %3311
      %3313 = vrot.lane.b32.xlu0 %v2803, 64
      %v3314 = vpop.permute.xlu0 %3313
      %3315 = vrot.lane.b32.xlu0 %v2853, 64
      %v3316 = vpop.permute.xlu0 %3315
      %3327 = vrot.lane.b32.xlu0 %v2469, 96
      %v3328 = vpop.permute.xlu0 %3327
      %3329 = vrot.lane.b32.xlu0 %v2581, 96
      %v3330 = vpop.permute.xlu0 %3329
      %3331 = vrot.lane.b32.xlu0 %v2693, 96
      %v3332 = vpop.permute.xlu0 %3331
      %3333 = vrot.lane.b32.xlu0 %v2805, 96
      %v3334 = vpop.permute.xlu0 %3333
      %3335 = vrot.lane.b32.xlu0 %v2861, 96
      %v3336 = vpop.permute.xlu0 %3335
      %vm3342 = vcmask 261120
      %v3343 = vsel %vm3342, %v943, %v2868
      %v3344 = vsel %vm3342, %v1055, %v2870
      %v3345 = vsel %vm3342, %v1167, %v2872
      %v3346 = vsel %vm3342, %v1279, %v2874
      %v3347 = vsel %vm3342, %v1325, %v2876
      %vm3348 = vcmask 523264
      %v3349 = vsel %vm3348, %v3343, %v2888
      %v3350 = vsel %vm3348, %v3344, %v2890
      %v3351 = vsel %vm3348, %v3345, %v2892
      %v3352 = vsel %vm3348, %v3346, %v2894
      %v3353 = vsel %vm3348, %v3347, %v2896
      %vm3354 = vcmask 785408
      %v3355 = vsel %vm3354, %v3349, %v2908
      %v3356 = vsel %vm3354, %v3350, %v2910
      %v3357 = vsel %vm3354, %v3351, %v2912
      %v3358 = vsel %vm3354, %v3352, %v2914
      %v3359 = vsel %vm3354, %v3353, %v2916
      %v3360 = vsel %vm3342, %v951, %v2928
      %v3361 = vsel %vm3342, %v1063, %v2930
      %v3362 = vsel %vm3342, %v1175, %v2932
      %v3363 = vsel %vm3342, %v1287, %v2934
      %v3364 = vsel %vm3342, %v1337, %v2936
      %v3365 = vsel %vm3348, %v3360, %v2948
      %v3366 = vsel %vm3348, %v3361, %v2950
      %v3367 = vsel %vm3348, %v3362, %v2952
      %v3368 = vsel %vm3348, %v3363, %v2954
      %v3369 = vsel %vm3348, %v3364, %v2956
      %v3370 = vsel %vm3354, %v3365, %v2968
      %v3371 = vsel %vm3354, %v3366, %v2970
      %v3372 = vsel %vm3354, %v3367, %v2972
      %v3373 = vsel %vm3354, %v3368, %v2974
      %v3374 = vsel %vm3354, %v3369, %v2976
      %v3375 = vsel %vm3342, %v1447, %v2988
      %v3376 = vsel %vm3342, %v1559, %v2990
      %v3377 = vsel %vm3342, %v1671, %v2992
      %v3378 = vsel %vm3342, %v1783, %v2994
      %v3379 = vsel %vm3342, %v1829, %v2996
      %v3380 = vsel %vm3348, %v3375, %v3008
      %v3381 = vsel %vm3348, %v3376, %v3010
      %v3382 = vsel %vm3348, %v3377, %v3012
      %v3383 = vsel %vm3348, %v3378, %v3014
      %v3384 = vsel %vm3348, %v3379, %v3016
      %v3385 = vsel %vm3354, %v3380, %v3028
      %v3386 = vsel %vm3354, %v3381, %v3030
      %v3387 = vsel %vm3354, %v3382, %v3032
      %v3388 = vsel %vm3354, %v3383, %v3034
      %v3389 = vsel %vm3354, %v3384, %v3036
      %v3390 = vsel %vm3342, %v1455, %v3048
      %v3391 = vsel %vm3342, %v1567, %v3050
      %v3392 = vsel %vm3342, %v1679, %v3052
      %v3393 = vsel %vm3342, %v1791, %v3054
      %v3394 = vsel %vm3342, %v1841, %v3056
      %v3395 = vsel %vm3348, %v3390, %v3068
      %v3396 = vsel %vm3348, %v3391, %v3070
      %v3397 = vsel %vm3348, %v3392, %v3072
      %v3398 = vsel %vm3348, %v3393, %v3074
      %v3399 = vsel %vm3348, %v3394, %v3076
      %v3400 = vsel %vm3354, %v3395, %v3088
      %v3401 = vsel %vm3354, %v3396, %v3090
      %v3402 = vsel %vm3354, %v3397, %v3092
      %v3403 = vsel %vm3354, %v3398, %v3094
      %v3404 = vsel %vm3354, %v3399, %v3096
      %v3405 = vsel %vm3342, %v1951, %v3108
      %v3406 = vsel %vm3342, %v2063, %v3110
      %v3407 = vsel %vm3342, %v2175, %v3112
      %v3408 = vsel %vm3342, %v2287, %v3114
      %v3409 = vsel %vm3342, %v2333, %v3116
      %v3410 = vsel %vm3348, %v3405, %v3128
      %v3411 = vsel %vm3348, %v3406, %v3130
      %v3412 = vsel %vm3348, %v3407, %v3132
      %v3413 = vsel %vm3348, %v3408, %v3134
      %v3414 = vsel %vm3348, %v3409, %v3136
      %v3415 = vsel %vm3354, %v3410, %v3148
      %v3416 = vsel %vm3354, %v3411, %v3150
      %v3417 = vsel %vm3354, %v3412, %v3152
      %v3418 = vsel %vm3354, %v3413, %v3154
      %v3419 = vsel %vm3354, %v3414, %v3156
      %v3420 = vsel %vm3342, %v1959, %v3168
      %v3421 = vsel %vm3342, %v2071, %v3170
      %v3422 = vsel %vm3342, %v2183, %v3172
      %v3423 = vsel %vm3342, %v2295, %v3174
      %v3424 = vsel %vm3342, %v2345, %v3176
      %v3425 = vsel %vm3348, %v3420, %v3188
      %v3426 = vsel %vm3348, %v3421, %v3190
      %v3427 = vsel %vm3348, %v3422, %v3192
      %v3428 = vsel %vm3348, %v3423, %v3194
      %v3429 = vsel %vm3348, %v3424, %v3196
      %v3430 = vsel %vm3354, %v3425, %v3208
      %v3431 = vsel %vm3354, %v3426, %v3210
      %v3432 = vsel %vm3354, %v3427, %v3212
      %v3433 = vsel %vm3354, %v3428, %v3214
      %v3434 = vsel %vm3354, %v3429, %v3216
      %v3435 = vsel %vm3342, %v2455, %v3228
      %v3436 = vsel %vm3342, %v2567, %v3230
      %v3437 = vsel %vm3342, %v2679, %v3232
      %v3438 = vsel %vm3342, %v2791, %v3234
      %v3439 = vsel %vm3342, %v2837, %v3236
      %v3440 = vsel %vm3348, %v3435, %v3248
      %v3441 = vsel %vm3348, %v3436, %v3250
      %v3442 = vsel %vm3348, %v3437, %v3252
      %v3443 = vsel %vm3348, %v3438, %v3254
      %v3444 = vsel %vm3348, %v3439, %v3256
      %v3445 = vsel %vm3354, %v3440, %v3268
      %v3446 = vsel %vm3354, %v3441, %v3270
      %v3447 = vsel %vm3354, %v3442, %v3272
      %v3448 = vsel %vm3354, %v3443, %v3274
      %v3449 = vsel %vm3354, %v3444, %v3276
      %v3450 = vsel %vm3342, %v2463, %v3288
      %v3451 = vsel %vm3342, %v2575, %v3290
      %v3452 = vsel %vm3342, %v2687, %v3292
      %v3453 = vsel %vm3342, %v2799, %v3294
      %v3454 = vsel %vm3342, %v2849, %v3296
      %v3455 = vsel %vm3348, %v3450, %v3308
      %v3456 = vsel %vm3348, %v3451, %v3310
      %v3457 = vsel %vm3348, %v3452, %v3312
      %v3458 = vsel %vm3348, %v3453, %v3314
      %v3459 = vsel %vm3348, %v3454, %v3316
      %v3460 = vsel %vm3354, %v3455, %v3328
      %v3461 = vsel %vm3354, %v3456, %v3330
      %v3462 = vsel %vm3354, %v3457, %v3332
      %v3463 = vsel %vm3354, %v3458, %v3334
      %v3464 = vsel %vm3354, %v3459, %v3336
      %v3465 = vld [vmem:[%s1] sm:$0xff]
      %v3466 = vld [vmem:[%s2] sm:$0xff]
      %3468 = vset.pattern.permute.xlu0 0
      %3469 = vperm.xlu0 %3468, %v3466
      %v3470 = vpop.permute.xlu0 %3469
      %vm3472 = vcmask 293888
      %v3474 = vsel %vm3472, %v3465, 0
      %vm3476 = vcmask 1043456
      %v3478 = vsel %vm3476, %v3359, 0
      %v3481 = vsel %vm3476, %v3374, 0
      %v3484 = vsel %vm3476, %v3389, 0
      %v3487 = vsel %vm3476, %v3404, 0
      %v3490 = vsel %vm3476, %v3419, 0
      %v3493 = vsel %vm3476, %v3434, 0
      %v3496 = vsel %vm3476, %v3449, 0
      %v3499 = vsel %vm3476, %v3464, 0
      %3501 = vmatpush.msra.mxu0 0.0
      %3502 = vmatpush.msra.mxu0 0.0
      %3503 = vmatpush.msra.mxu0 0.0
      %3504 = vmatpush.msra.mxu0 0.0
      %3505 = vmatpush.msra.mxu0 0.0
      %3506 = vmatpush.msra.mxu0 0.0
      %3507 = vmatpush.msra.mxu0 0.0
      %3508 = vmatpush.msra.mxu0 0.0
      %3509 = vmatpush.msra.mxu0 0.0
      %3510 = vmatpush.msra.mxu0 0.0
      %3511 = vmatpush.msra.mxu0 0.0
      %3512 = vmatpush.msra.mxu0 %v3478
      %3513 = vmatpush.msra.mxu0 %v3358
      %3514 = vmatpush.msra.mxu0 %v3357
      %3515 = vmatpush.msra.mxu0 %v3356
      %3516 = vmatpush.msra.mxu0 %v3355
      %3517 = vmatmul.f32.gmra.mxu0 %v3474
      %v3518 = vpop.f32.mrf.mxu0
      %v3519 = vadd.f32 %v3470, %v3518
      %3520 = vdwg.mxu0
      %3521 = vmatpush.msra.mxu0 0.0
      %3522 = vmatpush.msra.mxu0 0.0
      %3523 = vmatpush.msra.mxu0 0.0
      %3524 = vmatpush.msra.mxu0 0.0
      %3525 = vmatpush.msra.mxu0 0.0
      %3526 = vmatpush.msra.mxu0 0.0
      %3527 = vmatpush.msra.mxu0 0.0
      %3528 = vmatpush.msra.mxu0 0.0
      %3529 = vmatpush.msra.mxu0 0.0
      %3530 = vmatpush.msra.mxu0 0.0
      %3531 = vmatpush.msra.mxu0 0.0
      %3532 = vmatpush.msra.mxu0 %v3481
      %3533 = vmatpush.msra.mxu0 %v3373
      %3534 = vmatpush.msra.mxu0 %v3372
      %3535 = vmatpush.msra.mxu0 %v3371
      %3536 = vmatpush.msra.mxu0 %v3370
      %3537 = vmatmul.f32.gmra.mxu0 %v3474
      %v3538 = vpop.f32.mrf.mxu0
      %v3539 = vadd.f32 %v3470, %v3538
      %3540 = vdwg.mxu0
      %3541 = vmatpush.msra.mxu0 0.0
      %3542 = vmatpush.msra.mxu0 0.0
      %3543 = vmatpush.msra.mxu0 0.0
      %3544 = vmatpush.msra.mxu0 0.0
      %3545 = vmatpush.msra.mxu0 0.0
      %3546 = vmatpush.msra.mxu0 0.0
      %3547 = vmatpush.msra.mxu0 0.0
      %3548 = vmatpush.msra.mxu0 0.0
      %3549 = vmatpush.msra.mxu0 0.0
      %3550 = vmatpush.msra.mxu0 0.0
      %3551 = vmatpush.msra.mxu0 0.0
      %3552 = vmatpush.msra.mxu0 %v3484
      %3553 = vmatpush.msra.mxu0 %v3388
      %3554 = vmatpush.msra.mxu0 %v3387
      %3555 = vmatpush.msra.mxu0 %v3386
      %3556 = vmatpush.msra.mxu0 %v3385
      %3557 = vmatmul.f32.gmra.mxu0 %v3474
      %v3558 = vpop.f32.mrf.mxu0
      %v3559 = vadd.f32 %v3470, %v3558
      %3560 = vdwg.mxu0
      %3561 = vmatpush.msra.mxu0 0.0
      %3562 = vmatpush.msra.mxu0 0.0
      %3563 = vmatpush.msra.mxu0 0.0
      %3564 = vmatpush.msra.mxu0 0.0
      %3565 = vmatpush.msra.mxu0 0.0
      %3566 = vmatpush.msra.mxu0 0.0
      %3567 = vmatpush.msra.mxu0 0.0
      %3568 = vmatpush.msra.mxu0 0.0
      %3569 = vmatpush.msra.mxu0 0.0
      %3570 = vmatpush.msra.mxu0 0.0
      %3571 = vmatpush.msra.mxu0 0.0
      %3572 = vmatpush.msra.mxu0 %v3487
      %3573 = vmatpush.msra.mxu0 %v3403
      %3574 = vmatpush.msra.mxu0 %v3402
      %3575 = vmatpush.msra.mxu0 %v3401
      %3576 = vmatpush.msra.mxu0 %v3400
      %3577 = vmatmul.f32.gmra.mxu0 %v3474
      %v3578 = vpop.f32.mrf.mxu0
      %v3579 = vadd.f32 %v3470, %v3578
      %3580 = vdwg.mxu0
      %3581 = vmatpush.msra.mxu0 0.0
      %3582 = vmatpush.msra.mxu0 0.0
      %3583 = vmatpush.msra.mxu0 0.0
      %3584 = vmatpush.msra.mxu0 0.0
      %3585 = vmatpush.msra.mxu0 0.0
      %3586 = vmatpush.msra.mxu0 0.0
      %3587 = vmatpush.msra.mxu0 0.0
      %3588 = vmatpush.msra.mxu0 0.0
      %3589 = vmatpush.msra.mxu0 0.0
      %3590 = vmatpush.msra.mxu0 0.0
      %3591 = vmatpush.msra.mxu0 0.0
      %3592 = vmatpush.msra.mxu0 %v3490
      %3593 = vmatpush.msra.mxu0 %v3418
      %3594 = vmatpush.msra.mxu0 %v3417
      %3595 = vmatpush.msra.mxu0 %v3416
      %3596 = vmatpush.msra.mxu0 %v3415
      %3597 = vmatmul.f32.gmra.mxu0 %v3474
      %v3598 = vpop.f32.mrf.mxu0
      %v3599 = vadd.f32 %v3470, %v3598
      %3600 = vdwg.mxu0
      %3601 = vmatpush.msra.mxu0 0.0
      %3602 = vmatpush.msra.mxu0 0.0
      %3603 = vmatpush.msra.mxu0 0.0
      %3604 = vmatpush.msra.mxu0 0.0
      %3605 = vmatpush.msra.mxu0 0.0
      %3606 = vmatpush.msra.mxu0 0.0
      %3607 = vmatpush.msra.mxu0 0.0
      %3608 = vmatpush.msra.mxu0 0.0
      %3609 = vmatpush.msra.mxu0 0.0
      %3610 = vmatpush.msra.mxu0 0.0
      %3611 = vmatpush.msra.mxu0 0.0
      %3612 = vmatpush.msra.mxu0 %v3493
      %3613 = vmatpush.msra.mxu0 %v3433
      %3614 = vmatpush.msra.mxu0 %v3432
      %3615 = vmatpush.msra.mxu0 %v3431
      %3616 = vmatpush.msra.mxu0 %v3430
      %3617 = vmatmul.f32.gmra.mxu0 %v3474
      %v3618 = vpop.f32.mrf.mxu0
      %v3619 = vadd.f32 %v3470, %v3618
      %3620 = vdwg.mxu0
      %3621 = vmatpush.msra.mxu0 0.0
      %3622 = vmatpush.msra.mxu0 0.0
      %3623 = vmatpush.msra.mxu0 0.0
      %3624 = vmatpush.msra.mxu0 0.0
      %3625 = vmatpush.msra.mxu0 0.0
      %3626 = vmatpush.msra.mxu0 0.0
      %3627 = vmatpush.msra.mxu0 0.0
      %3628 = vmatpush.msra.mxu0 0.0
      %3629 = vmatpush.msra.mxu0 0.0
      %3630 = vmatpush.msra.mxu0 0.0
      %3631 = vmatpush.msra.mxu0 0.0
      %3632 = vmatpush.msra.mxu0 %v3496
      %3633 = vmatpush.msra.mxu0 %v3448
      %3634 = vmatpush.msra.mxu0 %v3447
      %3635 = vmatpush.msra.mxu0 %v3446
      %3636 = vmatpush.msra.mxu0 %v3445
      %3637 = vmatmul.f32.gmra.mxu0 %v3474
      %v3638 = vpop.f32.mrf.mxu0
      %v3639 = vadd.f32 %v3470, %v3638
      %3640 = vdwg.mxu0
      %3641 = vmatpush.msra.mxu0 0.0
      %3642 = vmatpush.msra.mxu0 0.0
      %3643 = vmatpush.msra.mxu0 0.0
      %3644 = vmatpush.msra.mxu0 0.0
      %3645 = vmatpush.msra.mxu0 0.0
      %3646 = vmatpush.msra.mxu0 0.0
      %3647 = vmatpush.msra.mxu0 0.0
      %3648 = vmatpush.msra.mxu0 0.0
      %3649 = vmatpush.msra.mxu0 0.0
      %3650 = vmatpush.msra.mxu0 0.0
      %3651 = vmatpush.msra.mxu0 0.0
      %3652 = vmatpush.msra.mxu0 %v3499
      %3653 = vmatpush.msra.mxu0 %v3463
      %3654 = vmatpush.msra.mxu0 %v3462
      %3655 = vmatpush.msra.mxu0 %v3461
      %3656 = vmatpush.msra.mxu0 %v3460
      %3657 = vmatmul.f32.gmra.mxu0 %v3474
      %v3658 = vpop.f32.mrf.mxu0
      %v3659 = vadd.f32 %v3470, %v3658
      %3660 = vdwg.mxu0
      %3661 = vst [vmem:[%s170] sm:$0xff] %v3519
      %3662 = vst [vmem:[%s170 + $0x8] sm:$0xff] %v3539
      %3663 = vst [vmem:[%s170 + $0x10] sm:$0xff] %v3559
      %3664 = vst [vmem:[%s170 + $0x18] sm:$0xff] %v3579
      %3665 = vst [vmem:[%s170 + $0x20] sm:$0xff] %v3599
      %3666 = vst [vmem:[%s170 + $0x28] sm:$0xff] %v3619
      %3667 = vst [vmem:[%s170 + $0x30] sm:$0xff] %v3639
      %3668 = vst [vmem:[%s170 + $0x38] sm:$0xff] %v3659
      %p3669 = scmp.lt.s32.totalorder %s14, 1
      %s3670 = scalar_select %p3669, %s14, 1
      %s3671 = smul.addr %s3670, 8
      %s3672 = smul.addr %s3671, 8
      %s3673 = scalar_lea.vmem %s3, %s3672
      // Predicated region
      $region33: #{deconv_forward.1} parent=31 // pred_check
        %p3674 = pneg %p100
      $region34: #{deconv_forward.1} parent=31 // pred_check_branch
        %3676 = sbr.rel (%p3674) target = $region36
      $region35: #{deconv_forward.1} parent=31 // pred_region
        _
      $region36: #{deconv_forward.1} parent=31 // pred_fallthru
        _
    $region32: #{deconv_forward.1} parent=5 // pred_fallthru
      _
    %p3677 = scmp.le.s32.totalorder 2, %s9
    // Predicated region
    $region37: #{deconv_forward.1} parent=5 // pred_check
      %p3678 = pneg %p3677
    $region38: #{deconv_forward.1} parent=5 // pred_check_branch
      %3680 = sbr.rel (%p3678) target = $region40
    $region39: #{deconv_forward.1} parent=5 // pred_region
      %s3681 = ssub.s32 %s9, 2
      // Predicated region
      $region41: #{deconv_forward.1} parent=39 // pred_check
        %p3682 = pneg %p106
      $region42: #{deconv_forward.1} parent=39 // pred_check_branch
        %3684 = sbr.rel (%p3682) target = $region44
      $region43: #{deconv_forward.1} parent=39 // pred_region
        %p3685 = scmp.lt.s32.totalorder %s15, 1
        %s3686 = scalar_select %p3685, %s15, 1
        %s3687 = smul.addr %s3686, 8
        %s3688 = smul.addr %s3687, 8
        %s3689 = scalar_lea.vmem %s3, %s3688
      $region44: #{deconv_forward.1} parent=39 // pred_fallthru
        _
    $region40: #{deconv_forward.1} parent=5 // pred_fallthru
      _
  $region6: #{deconv_forward.1} parent=0 // loop_footer
    %s13 = sadd.s32 1, %s9
  $region7: #{deconv_forward.1} parent=0 // loop_footer_branch
    %8 = sbr.rel target = $region3
  $region8: #{deconv_forward.1} parent=0 // loop_exit
    _

</llo_original>
